<compile_context>
chip_gen: v7x
topology: tpu7x:2x2x1
jax: 0.10.0
libtpu: 0.0.40
codegen_flags: <defaults>
</compile_context>

<pallas_src>
import jax
import jax.numpy as jnp
from jax import lax
from jax.experimental import pallas as pl
from jax.experimental.pallas import tpu as pltpu

# ---------------- problem sizes (small, consistent with the module) ----------
B = 2                # batch
T = 4                # frames per trajectory (max_ep_len)
BT = B * T           # obs leading dim, rows ordered (b*T + t)
H = W = 16           # spatial
HW = H * W           # 256 -> lane-dense axis
C_IN = 3             # channel expand inside the (synthetic) encoder
K = 3                # conv kernel
KK = K * K           # single-channel patch width (channel-collapsed)
PD = C_IN * KK       # 3-channel patch width (reference only)
C_FEAT = 8           # conv output channels
EMB = 16             # per-frame embedding (LSTM input size)
HID = 32             # lstm hidden == encoder.output_size
GATES = 4 * HID      # 128
CH1 = CH2 = 64       # MLPCritic hidden sizes
LANES = 128          # packed-parameter lane width (== GATES)

# ---- packed VMEM parameter slab: static row offsets (all rows LANES wide) ----
ROW_W_IH = 0                         # (EMB, GATES)
ROW_W_HH = ROW_W_IH + EMB            # (HID, GATES)
ROW_W_C1 = ROW_W_HH + HID            # (HID, CH1 -> zero-padded to LANES)
ROW_W_C2 = ROW_W_C1 + HID            # (CH1, CH2 -> padded)
ROW_W_FC = ROW_W_C2 + CH1            # (C_FEAT, EMB -> padded), pre-scaled by 1/HW
ROW_B_LSTM = ROW_W_FC + C_FEAT       # (1, GATES)        b_ih + b_hh pre-summed
ROW_B_FC = ROW_B_LSTM + 1            # (1, EMB -> padded)
ROW_B_C1 = ROW_B_FC + 1              # (1, CH1 -> padded)
ROW_B_C2 = ROW_B_C1 + 1              # (1, CH2 -> padded)
ROW_W_C3 = ROW_B_C2 + 1              # (1, CH2 -> padded) = w_c3.T
PK_ROWS = ((ROW_W_C3 + 1 + 7) // 8) * 8      # 160

# ---- SMEM scalar pack offsets ------------------------------------------------
OFF_WCONV = 0                        # C_FEAT*KK channel-collapsed conv weights
OFF_BCONV = OFF_WCONV + C_FEAT * KK  # C_FEAT conv biases
OFF_BC3 = OFF_BCONV + C_FEAT         # final critic bias
SCAL_LEN = OFF_BC3 + 1               # 81


# ---------------- fused Pallas kernel: encoder (CNN + LSTM) + critic MLP -----
def image_critic_kernel(patches_ref, pk_ref, scal_ref, v_ref):
    f32 = jnp.float32

    # ---- 3x3 conv (VPU FMAs) + ReLU + global-mean-pool + FC, fully fused ----
    # taps[k]: lane-dense (BT, HW) slab of patch element k (k = ky*3 + kx),
    # aligned 8-row static block loads.
    taps = [patches_ref[k * BT:(k + 1) * BT, :] for k in range(KK)]

    b_fc = pk_ref[ROW_B_FC:ROW_B_FC + 1, 0:EMB]                  # (1, EMB)
    emb = jnp.broadcast_to(b_fc, (BT, EMB))
    for ch in range(C_FEAT):
        # 9 scalar-broadcast multiply-adds on full 256-lane rows (VPU).
        acc = scal_ref[OFF_WCONV + ch * KK] * taps[0]
        for k in range(1, KK):
            acc = acc + scal_ref[OFF_WCONV + ch * KK + k] * taps[k]
        acc = jnp.maximum(acc + scal_ref[OFF_BCONV + ch], 0.0)    # (BT, HW)
        pooled = jnp.sum(acc, axis=-1, keepdims=True)             # (BT, 1) lane reduce
        # FC fused as a rank-1 update; w_fc row is pre-scaled by 1/HW (mean folded).
        wfc_row = pk_ref[ROW_W_FC + ch:ROW_W_FC + ch + 1, 0:EMB]  # (1, EMB)
        emb = emb + pooled * wfc_row
    emb = jnp.maximum(emb, 0.0)                                   # (BT, EMB)

    # ---- LSTM: input projection hoisted out of the recurrence ---------------
    w_ih = pk_ref[ROW_W_IH:ROW_W_IH + EMB, :]                     # (EMB, 4*HID)
    b_lstm = pk_ref[ROW_B_LSTM:ROW_B_LSTM + 1, :]                 # (1, 4*HID)
    gates_x = jnp.dot(emb, w_ih, preferred_element_type=f32) + b_lstm   # (BT, 4*HID)
    # one-time (b*T+t) -> (t*B+b) reorder so each step reads a contiguous block
    gx_tm = jnp.concatenate(
        [gates_x[b * T + t:b * T + t + 1, :] for t in range(T) for b in range(B)],
        axis=0)                                                   # (BT, 4*HID)

    w_hh = pk_ref[ROW_W_HH:ROW_W_HH + HID, :]                     # (HID, 4*HID)
    lane = lax.broadcasted_iota(jnp.int32, (B, GATES), 1)
    g_lane = (lane >= 2 * HID) & (lane < 3 * HID)                 # tanh-gate lanes

    h = jnp.zeros((B, HID), f32)
    c_state = jnp.zeros((B, HID), f32)
    hs = []
    for t in range(T):                                            # T=4: fully unrolled
        gates = gx_tm[t * B:(t + 1) * B, :] + jnp.dot(
            h, w_hh, preferred_element_type=f32)                  # (B, 4*HID)
        # full-vreg transcendentals blended by the gate lane mask
        acts = jnp.where(g_lane, jnp.tanh(gates), jax.nn.sigmoid(gates))
        i_g = acts[:, 0 * HID:1 * HID]
        f_g = acts[:, 1 * HID:2 * HID]
        g_g = acts[:, 2 * HID:3 * HID]
        o_g = acts[:, 3 * HID:4 * HID]
        c_state = f_g * c_state + i_g * g_g
        h = o_g * jnp.tanh(c_state)
        hs.append(h)                                              # stays in vregs

    # reassemble encoder output in the module's (b*T + t) row order
    y = jnp.concatenate(
        [hs[t][b:b + 1, :] for b in range(B) for t in range(T)], axis=0)   # (BT, HID)

    # ---- MLPCritic: HID -> 64 -> 64 -> 1 -------------------------------------
    w_c1 = pk_ref[ROW_W_C1:ROW_W_C1 + HID, :]                     # cols >= CH1 are zero
    b_c1 = pk_ref[ROW_B_C1:ROW_B_C1 + 1, :]
    h1 = jnp.maximum(jnp.dot(y, w_c1, preferred_element_type=f32) + b_c1, 0.0)
    w_c2 = pk_ref[ROW_W_C2:ROW_W_C2 + CH1, :]                     # cols >= CH2 are zero
    b_c2 = pk_ref[ROW_B_C2:ROW_B_C2 + 1, :]
    h2 = jnp.maximum(
        jnp.dot(h1[:, 0:CH1], w_c2, preferred_element_type=f32) + b_c2, 0.0)
    # last layer (N=1): VPU multiply + lane reduce instead of a 1-column MXU pass
    w_c3r = pk_ref[ROW_W_C3:ROW_W_C3 + 1, :]                      # (1, 128), zero-padded
    v = jnp.sum(h2 * w_c3r, axis=-1, keepdims=True) + scal_ref[OFF_BC3]
    v_ref[...] = v                                                # (BT, 1), single store


# ---------------- im2col helpers (wrapper-side, XLA) --------------------------
def im2col_taps(x):
    """x: (BT, H, W) -> (KK*BT, HW); tap-major rows (k*BT + n), lane-dense HW.
    3x3, stride 1, pad 1; tap order k = ky*3 + kx.  No transpose needed."""
    xp = jnp.pad(x, ((0, 0), (1, 1), (1, 1)))
    cols = [xp[:, dy:dy + H, dx:dx + W] for dy in range(K) for dx in range(K)]
    return jnp.stack(cols, axis=0).reshape(KK * BT, HW)


def im2col_3x3_3ch(x):
    """Reference path. x: (N, C, H, W) -> (N, H*W, C*9), order c*9 + (ky*3+kx)."""
    n, c, h, w = x.shape
    xp = jnp.pad(x, ((0, 0), (0, 0), (1, 1), (1, 1)))
    cols = [xp[:, :, dy:dy + h, dx:dx + w] for dy in range(K) for dx in range(K)]
    p = jnp.stack(cols, axis=2)                                   # (N, C, 9, H, W)
    return p.reshape(n, c * KK, h * w).transpose(0, 2, 1)         # (N, HW, C*9)


# ---------------- wrapper: ImageCritic.forward --------------------------------
@jax.jit
def image_critic_forward(obs, params):
    """obs: (BT, H, W) float32, rows ordered (b*T + t)  ->  value (BT,)."""
    assert obs.shape == (BT, H, W)
    # Channel-collapsed, lane-dense im2col: the encoder's 3-channel expand
    # duplicates the frame, so conv weights are pre-summed over C_IN and the
    # patches use a single channel.  One small XLA fusion, no transposes.
    patches = im2col_taps(obs.astype(jnp.float32))                # (KK*BT, HW)

    v = pl.pallas_call(
        image_critic_kernel,
        out_shape=jax.ShapeDtypeStruct((BT, 1), jnp.float32),
        in_specs=[
            pl.BlockSpec(memory_space=pltpu.MemorySpace.VMEM),    # patches (72, 256)
            pl.BlockSpec(memory_space=pltpu.MemorySpace.VMEM),    # packed weights (160, 128)
            pl.BlockSpec(memory_space=pltpu.MemorySpace.SMEM),    # scalar pack (81,)
        ],
        out_specs=pl.BlockSpec(memory_space=pltpu.MemorySpace.VMEM),
    )(patches, params["pk"], params["scal"])

    # rows already in the module's (b*T + t) order; torch.squeeze(-1) -> (BT,)
    return v.reshape(BT)


# ---------------- pure-JAX reference (faithful 3-channel semantics) -----------
def reference_forward(obs, params):
    bt = obs.shape[0]
    x = jnp.broadcast_to(obs[:, None, :, :], (bt, C_IN, H, W)).astype(jnp.float32)
    patches = im2col_3x3_3ch(x)                                   # (BT, HW, 27)
    feat = jnp.maximum(patches @ params["w_conv_mat"] + params["b_conv"], 0.0)
    pooled = feat.mean(axis=1)                                    # (BT, C_FEAT)
    emb = jnp.maximum(pooled @ params["w_fc"] + params["b_fc"], 0.0)
    xs = emb.reshape(B, T, EMB).transpose(1, 0, 2)                # (T, B, EMB)

    def step(carry, x_t):
        h, c = carry
        gates = x_t @ params["w_ih"] + h @ params["w_hh"] + params["b_lstm"]
        i_g = jax.nn.sigmoid(gates[:, 0 * HID:1 * HID])
        f_g = jax.nn.sigmoid(gates[:, 1 * HID:2 * HID])
        g_g = jnp.tanh(gates[:, 2 * HID:3 * HID])
        o_g = jax.nn.sigmoid(gates[:, 3 * HID:4 * HID])
        c = f_g * c + i_g * g_g
        h = o_g * jnp.tanh(c)
        return (h, c), h

    h0 = jnp.zeros((B, HID), jnp.float32)
    (_, _), ys = lax.scan(step, (h0, h0), xs)
    y = ys.transpose(1, 0, 2).reshape(bt, HID)                    # (BT, HID)

    h1 = jnp.maximum(y @ params["w_c1"] + params["b_c1"], 0.0)
    h2 = jnp.maximum(h1 @ params["w_c2"] + params["b_c2"], 0.0)
    v = h2 @ params["w_c3"] + params["b_c3"]                      # (BT, 1)
    return v[:, 0]


# ---------------- deterministic parameter init + kernel-side packing ----------
def _pad_lanes(a, width=LANES):
    return jnp.pad(a, ((0, 0), (0, width - a.shape[1])))


def make_params(key):
    ks = jax.random.split(key, 13)
    w_conv = 0.1 * jax.random.normal(ks[0], (C_FEAT, C_IN, K, K), jnp.float32)
    b_conv = 0.1 * jax.random.normal(ks[1], (C_FEAT,), jnp.float32)
    w_fc = 0.1 * jax.random.normal(ks[2], (C_FEAT, EMB), jnp.float32)
    b_fc = 0.1 * jax.random.normal(ks[3], (EMB,), jnp.float32)
    w_ih = 0.1 * jax.random.normal(ks[4], (EMB, GATES), jnp.float32)
    w_hh = 0.1 * jax.random.normal(ks[5], (HID, GATES), jnp.float32)
    # NOTE: models b_ih + b_hh as one pre-summed bias (sum at export for real ckpts)
    b_lstm = 0.1 * jax.random.normal(ks[6], (GATES,), jnp.float32)
    w_c1 = 0.1 * jax.random.normal(ks[7], (HID, CH1), jnp.float32)
    b_c1 = 0.1 * jax.random.normal(ks[8], (CH1,), jnp.float32)
    w_c2 = 0.1 * jax.random.normal(ks[9], (CH1, CH2), jnp.float32)
    b_c2 = 0.1 * jax.random.normal(ks[10], (CH2,), jnp.float32)
    w_c3 = 0.1 * jax.random.normal(ks[11], (CH2, 1), jnp.float32)
    b_c3 = 0.1 * jax.random.normal(ks[12], (1,), jnp.float32)

    # ---- packed VMEM slab: one DMA for all matrix weights + bias rows --------
    pk = jnp.concatenate([
        _pad_lanes(w_ih),                 # ROW_W_IH
        _pad_lanes(w_hh),                 # ROW_W_HH
        _pad_lanes(w_c1),                 # ROW_W_C1
        _pad_lanes(w_c2),                 # ROW_W_C2
        _pad_lanes(w_fc / float(HW)),     # ROW_W_FC  (global-mean 1/HW folded in)
        _pad_lanes(b_lstm[None, :]),      # ROW_B_LSTM
        _pad_lanes(b_fc[None, :]),        # ROW_B_FC
        _pad_lanes(b_c1[None, :]),        # ROW_B_C1
        _pad_lanes(b_c2[None, :]),        # ROW_B_C2
        _pad_lanes(w_c3.T),               # ROW_W_C3
    ], axis=0)
    pk = jnp.pad(pk, ((0, PK_ROWS - pk.shape[0]), (0, 0)))        # (160, 128)

    # ---- packed SMEM scalars: channel-collapsed conv + final bias ------------
    # Valid only because the synthetic encoder's 3 input channels are identical
    # copies of the frame (sum over C_IN); real RGB encoders need the 27-wide path.
    scal = jnp.concatenate([
        w_conv.sum(axis=1).reshape(C_FEAT * KK),                  # 72
        b_conv,                                                   # 8
        b_c3,                                                     # 1
    ])
    assert scal.shape == (SCAL_LEN,)

    return {
        # kernel operands (packed)
        "pk": pk, "scal": scal,
        # reference (faithful 3-channel) parameters
        "w_conv_mat": w_conv.reshape(C_FEAT, PD).T,
        "b_conv": b_conv, "w_fc": w_fc, "b_fc": b_fc,
        "w_ih": w_ih, "w_hh": w_hh, "b_lstm": b_lstm,
        "w_c1": w_c1, "b_c1": b_c1, "w_c2": w_c2, "b_c2": b_c2,
        "w_c3": w_c3, "b_c3": b_c3,
    }


if __name__ == "__main__":
    key = jax.random.PRNGKey(0)
    k_param, k_obs = jax.random.split(key)
    params = make_params(k_param)
    obs = jax.random.uniform(k_obs, (BT, H, W), jnp.float32)      # (BT, H, W)

    v = jax.block_until_ready(image_critic_forward(obs, params))
    assert v.shape == (BT,), v.shape

    v_ref = jax.block_until_ready(reference_forward(obs, params))
    err = float(jnp.max(jnp.abs(v - v_ref)))
    # f32 everywhere; small slack for default-precision MXU dots in the XLA reference
    assert err < 5e-4, err

    print("KERNEL_OK")
</pallas_src>

<mosaic_0001>
module attributes {stable_mosaic.version = 11 : i64} {
  func.func @image_critic_kernel(%arg0: memref<72x256xf32, #tpu.memory_space<vmem>>, %arg1: memref<160x128xf32, #tpu.memory_space<vmem>>, %arg2: memref<81xf32, #tpu.memory_space<smem>>, %arg3: memref<8x1xf32, #tpu.memory_space<vmem>>) attributes {dimension_semantics = [], scalar_prefetch = 0 : i64, scratch_operands = 0 : i64, tpu.core_type = #tpu.core_type<tc>} {
    %c0 = arith.constant 0 : index
    %c0_0 = arith.constant 0 : index
    %0 = vector.load %arg0[%c0, %c0_0] : memref<72x256xf32, #tpu.memory_space<vmem>>, vector<8x256xf32>
    %c8 = arith.constant 8 : index
    %c0_1 = arith.constant 0 : index
    %1 = vector.load %arg0[%c8, %c0_1] : memref<72x256xf32, #tpu.memory_space<vmem>>, vector<8x256xf32>
    %c16 = arith.constant 16 : index
    %c0_2 = arith.constant 0 : index
    %2 = vector.load %arg0[%c16, %c0_2] : memref<72x256xf32, #tpu.memory_space<vmem>>, vector<8x256xf32>
    %c24 = arith.constant 24 : index
    %c0_3 = arith.constant 0 : index
    %3 = vector.load %arg0[%c24, %c0_3] : memref<72x256xf32, #tpu.memory_space<vmem>>, vector<8x256xf32>
    %c32 = arith.constant 32 : index
    %c0_4 = arith.constant 0 : index
    %4 = vector.load %arg0[%c32, %c0_4] : memref<72x256xf32, #tpu.memory_space<vmem>>, vector<8x256xf32>
    %c40 = arith.constant 40 : index
    %c0_5 = arith.constant 0 : index
    %5 = vector.load %arg0[%c40, %c0_5] : memref<72x256xf32, #tpu.memory_space<vmem>>, vector<8x256xf32>
    %c48 = arith.constant 48 : index
    %c0_6 = arith.constant 0 : index
    %6 = vector.load %arg0[%c48, %c0_6] : memref<72x256xf32, #tpu.memory_space<vmem>>, vector<8x256xf32>
    %c56 = arith.constant 56 : index
    %c0_7 = arith.constant 0 : index
    %7 = vector.load %arg0[%c56, %c0_7] : memref<72x256xf32, #tpu.memory_space<vmem>>, vector<8x256xf32>
    %c64 = arith.constant 64 : index
    %c0_8 = arith.constant 0 : index
    %8 = vector.load %arg0[%c64, %c0_8] : memref<72x256xf32, #tpu.memory_space<vmem>>, vector<8x256xf32>
    %c153 = arith.constant 153 : index
    %c0_9 = arith.constant 0 : index
    %9 = vector.load %arg1[%c153, %c0_9] : memref<160x128xf32, #tpu.memory_space<vmem>>, vector<1x16xf32>
    %10 = vector.shape_cast %9 : vector<1x16xf32> to vector<1x16xf32>
    %11 = vector.broadcast %10 : vector<1x16xf32> to vector<8x16xf32>
    %c0_10 = arith.constant 0 : index
    %12 = memref.load %arg2[%c0_10] : memref<81xf32, #tpu.memory_space<smem>>
    %13 = vector.broadcast %12 : f32 to vector<8x256xf32>
    %14 = arith.mulf %13, %0 : vector<8x256xf32>
    %c1 = arith.constant 1 : index
    %15 = memref.load %arg2[%c1] : memref<81xf32, #tpu.memory_space<smem>>
    %16 = vector.broadcast %15 : f32 to vector<8x256xf32>
    %17 = arith.mulf %16, %1 : vector<8x256xf32>
    %18 = arith.addf %14, %17 : vector<8x256xf32>
    %c2 = arith.constant 2 : index
    %19 = memref.load %arg2[%c2] : memref<81xf32, #tpu.memory_space<smem>>
    %20 = vector.broadcast %19 : f32 to vector<8x256xf32>
    %21 = arith.mulf %20, %2 : vector<8x256xf32>
    %22 = arith.addf %18, %21 : vector<8x256xf32>
    %c3 = arith.constant 3 : index
    %23 = memref.load %arg2[%c3] : memref<81xf32, #tpu.memory_space<smem>>
    %24 = vector.broadcast %23 : f32 to vector<8x256xf32>
    %25 = arith.mulf %24, %3 : vector<8x256xf32>
    %26 = arith.addf %22, %25 : vector<8x256xf32>
    %c4 = arith.constant 4 : index
    %27 = memref.load %arg2[%c4] : memref<81xf32, #tpu.memory_space<smem>>
    %28 = vector.broadcast %27 : f32 to vector<8x256xf32>
    %29 = arith.mulf %28, %4 : vector<8x256xf32>
    %30 = arith.addf %26, %29 : vector<8x256xf32>
    %c5 = arith.constant 5 : index
    %31 = memref.load %arg2[%c5] : memref<81xf32, #tpu.memory_space<smem>>
    %32 = vector.broadcast %31 : f32 to vector<8x256xf32>
    %33 = arith.mulf %32, %5 : vector<8x256xf32>
    %34 = arith.addf %30, %33 : vector<8x256xf32>
    %c6 = arith.constant 6 : index
    %35 = memref.load %arg2[%c6] : memref<81xf32, #tpu.memory_space<smem>>
    %36 = vector.broadcast %35 : f32 to vector<8x256xf32>
    %37 = arith.mulf %36, %6 : vector<8x256xf32>
    %38 = arith.addf %34, %37 : vector<8x256xf32>
    %c7 = arith.constant 7 : index
    %39 = memref.load %arg2[%c7] : memref<81xf32, #tpu.memory_space<smem>>
    %40 = vector.broadcast %39 : f32 to vector<8x256xf32>
    %41 = arith.mulf %40, %7 : vector<8x256xf32>
    %42 = arith.addf %38, %41 : vector<8x256xf32>
    %c8_11 = arith.constant 8 : index
    %43 = memref.load %arg2[%c8_11] : memref<81xf32, #tpu.memory_space<smem>>
    %44 = vector.broadcast %43 : f32 to vector<8x256xf32>
    %45 = arith.mulf %44, %8 : vector<8x256xf32>
    %46 = arith.addf %42, %45 : vector<8x256xf32>
    %c72 = arith.constant 72 : index
    %47 = memref.load %arg2[%c72] : memref<81xf32, #tpu.memory_space<smem>>
    %48 = vector.broadcast %47 : f32 to vector<8x256xf32>
    %49 = arith.addf %46, %48 : vector<8x256xf32>
    %cst = arith.constant 0.000000e+00 : f32
    %50 = vector.broadcast %cst : f32 to vector<8x256xf32>
    %51 = arith.maximumf %49, %50 : vector<8x256xf32>
    %cst_12 = arith.constant dense<0.000000e+00> : vector<8xf32>
    %52 = vector.multi_reduction <add>, %51, %cst_12 [1] : vector<8x256xf32> to vector<8xf32>
    %53 = vector.shape_cast %52 : vector<8xf32> to vector<8x1xf32>
    %c144 = arith.constant 144 : index
    %c0_13 = arith.constant 0 : index
    %54 = vector.load %arg1[%c144, %c0_13] : memref<160x128xf32, #tpu.memory_space<vmem>>, vector<1x16xf32>
    %55 = vector.broadcast %53 : vector<8x1xf32> to vector<8x16xf32>
    %56 = vector.broadcast %54 : vector<1x16xf32> to vector<8x16xf32>
    %57 = arith.mulf %55, %56 : vector<8x16xf32>
    %58 = arith.addf %11, %57 : vector<8x16xf32>
    %c9 = arith.constant 9 : index
    %59 = memref.load %arg2[%c9] : memref<81xf32, #tpu.memory_space<smem>>
    %60 = vector.broadcast %59 : f32 to vector<8x256xf32>
    %61 = arith.mulf %60, %0 : vector<8x256xf32>
    %c10 = arith.constant 10 : index
    %62 = memref.load %arg2[%c10] : memref<81xf32, #tpu.memory_space<smem>>
    %63 = vector.broadcast %62 : f32 to vector<8x256xf32>
    %64 = arith.mulf %63, %1 : vector<8x256xf32>
    %65 = arith.addf %61, %64 : vector<8x256xf32>
    %c11 = arith.constant 11 : index
    %66 = memref.load %arg2[%c11] : memref<81xf32, #tpu.memory_space<smem>>
    %67 = vector.broadcast %66 : f32 to vector<8x256xf32>
    %68 = arith.mulf %67, %2 : vector<8x256xf32>
    %69 = arith.addf %65, %68 : vector<8x256xf32>
    %c12 = arith.constant 12 : index
    %70 = memref.load %arg2[%c12] : memref<81xf32, #tpu.memory_space<smem>>
    %71 = vector.broadcast %70 : f32 to vector<8x256xf32>
    %72 = arith.mulf %71, %3 : vector<8x256xf32>
    %73 = arith.addf %69, %72 : vector<8x256xf32>
    %c13 = arith.constant 13 : index
    %74 = memref.load %arg2[%c13] : memref<81xf32, #tpu.memory_space<smem>>
    %75 = vector.broadcast %74 : f32 to vector<8x256xf32>
    %76 = arith.mulf %75, %4 : vector<8x256xf32>
    %77 = arith.addf %73, %76 : vector<8x256xf32>
    %c14 = arith.constant 14 : index
    %78 = memref.load %arg2[%c14] : memref<81xf32, #tpu.memory_space<smem>>
    %79 = vector.broadcast %78 : f32 to vector<8x256xf32>
    %80 = arith.mulf %79, %5 : vector<8x256xf32>
    %81 = arith.addf %77, %80 : vector<8x256xf32>
    %c15 = arith.constant 15 : index
    %82 = memref.load %arg2[%c15] : memref<81xf32, #tpu.memory_space<smem>>
    %83 = vector.broadcast %82 : f32 to vector<8x256xf32>
    %84 = arith.mulf %83, %6 : vector<8x256xf32>
    %85 = arith.addf %81, %84 : vector<8x256xf32>
    %c16_14 = arith.constant 16 : index
    %86 = memref.load %arg2[%c16_14] : memref<81xf32, #tpu.memory_space<smem>>
    %87 = vector.broadcast %86 : f32 to vector<8x256xf32>
    %88 = arith.mulf %87, %7 : vector<8x256xf32>
    %89 = arith.addf %85, %88 : vector<8x256xf32>
    %c17 = arith.constant 17 : index
    %90 = memref.load %arg2[%c17] : memref<81xf32, #tpu.memory_space<smem>>
    %91 = vector.broadcast %90 : f32 to vector<8x256xf32>
    %92 = arith.mulf %91, %8 : vector<8x256xf32>
    %93 = arith.addf %89, %92 : vector<8x256xf32>
    %c73 = arith.constant 73 : index
    %94 = memref.load %arg2[%c73] : memref<81xf32, #tpu.memory_space<smem>>
    %95 = vector.broadcast %94 : f32 to vector<8x256xf32>
    %96 = arith.addf %93, %95 : vector<8x256xf32>
    %cst_15 = arith.constant 0.000000e+00 : f32
    %97 = vector.broadcast %cst_15 : f32 to vector<8x256xf32>
    %98 = arith.maximumf %96, %97 : vector<8x256xf32>
    %cst_16 = arith.constant dense<0.000000e+00> : vector<8xf32>
    %99 = vector.multi_reduction <add>, %98, %cst_16 [1] : vector<8x256xf32> to vector<8xf32>
    %100 = vector.shape_cast %99 : vector<8xf32> to vector<8x1xf32>
    %c145 = arith.constant 145 : index
    %c0_17 = arith.constant 0 : index
    %101 = vector.load %arg1[%c145, %c0_17] : memref<160x128xf32, #tpu.memory_space<vmem>>, vector<1x16xf32>
    %102 = vector.broadcast %100 : vector<8x1xf32> to vector<8x16xf32>
    %103 = vector.broadcast %101 : vector<1x16xf32> to vector<8x16xf32>
    %104 = arith.mulf %102, %103 : vector<8x16xf32>
    %105 = arith.addf %58, %104 : vector<8x16xf32>
    %c18 = arith.constant 18 : index
    %106 = memref.load %arg2[%c18] : memref<81xf32, #tpu.memory_space<smem>>
    %107 = vector.broadcast %106 : f32 to vector<8x256xf32>
    %108 = arith.mulf %107, %0 : vector<8x256xf32>
    %c19 = arith.constant 19 : index
    %109 = memref.load %arg2[%c19] : memref<81xf32, #tpu.memory_space<smem>>
    %110 = vector.broadcast %109 : f32 to vector<8x256xf32>
    %111 = arith.mulf %110, %1 : vector<8x256xf32>
    %112 = arith.addf %108, %111 : vector<8x256xf32>
    %c20 = arith.constant 20 : index
    %113 = memref.load %arg2[%c20] : memref<81xf32, #tpu.memory_space<smem>>
    %114 = vector.broadcast %113 : f32 to vector<8x256xf32>
    %115 = arith.mulf %114, %2 : vector<8x256xf32>
    %116 = arith.addf %112, %115 : vector<8x256xf32>
    %c21 = arith.constant 21 : index
    %117 = memref.load %arg2[%c21] : memref<81xf32, #tpu.memory_space<smem>>
    %118 = vector.broadcast %117 : f32 to vector<8x256xf32>
    %119 = arith.mulf %118, %3 : vector<8x256xf32>
    %120 = arith.addf %116, %119 : vector<8x256xf32>
    %c22 = arith.constant 22 : index
    %121 = memref.load %arg2[%c22] : memref<81xf32, #tpu.memory_space<smem>>
    %122 = vector.broadcast %121 : f32 to vector<8x256xf32>
    %123 = arith.mulf %122, %4 : vector<8x256xf32>
    %124 = arith.addf %120, %123 : vector<8x256xf32>
    %c23 = arith.constant 23 : index
    %125 = memref.load %arg2[%c23] : memref<81xf32, #tpu.memory_space<smem>>
    %126 = vector.broadcast %125 : f32 to vector<8x256xf32>
    %127 = arith.mulf %126, %5 : vector<8x256xf32>
    %128 = arith.addf %124, %127 : vector<8x256xf32>
    %c24_18 = arith.constant 24 : index
    %129 = memref.load %arg2[%c24_18] : memref<81xf32, #tpu.memory_space<smem>>
    %130 = vector.broadcast %129 : f32 to vector<8x256xf32>
    %131 = arith.mulf %130, %6 : vector<8x256xf32>
    %132 = arith.addf %128, %131 : vector<8x256xf32>
    %c25 = arith.constant 25 : index
    %133 = memref.load %arg2[%c25] : memref<81xf32, #tpu.memory_space<smem>>
    %134 = vector.broadcast %133 : f32 to vector<8x256xf32>
    %135 = arith.mulf %134, %7 : vector<8x256xf32>
    %136 = arith.addf %132, %135 : vector<8x256xf32>
    %c26 = arith.constant 26 : index
    %137 = memref.load %arg2[%c26] : memref<81xf32, #tpu.memory_space<smem>>
    %138 = vector.broadcast %137 : f32 to vector<8x256xf32>
    %139 = arith.mulf %138, %8 : vector<8x256xf32>
    %140 = arith.addf %136, %139 : vector<8x256xf32>
    %c74 = arith.constant 74 : index
    %141 = memref.load %arg2[%c74] : memref<81xf32, #tpu.memory_space<smem>>
    %142 = vector.broadcast %141 : f32 to vector<8x256xf32>
    %143 = arith.addf %140, %142 : vector<8x256xf32>
    %cst_19 = arith.constant 0.000000e+00 : f32
    %144 = vector.broadcast %cst_19 : f32 to vector<8x256xf32>
    %145 = arith.maximumf %143, %144 : vector<8x256xf32>
    %cst_20 = arith.constant dense<0.000000e+00> : vector<8xf32>
    %146 = vector.multi_reduction <add>, %145, %cst_20 [1] : vector<8x256xf32> to vector<8xf32>
    %147 = vector.shape_cast %146 : vector<8xf32> to vector<8x1xf32>
    %c146 = arith.constant 146 : index
    %c0_21 = arith.constant 0 : index
    %148 = vector.load %arg1[%c146, %c0_21] : memref<160x128xf32, #tpu.memory_space<vmem>>, vector<1x16xf32>
    %149 = vector.broadcast %147 : vector<8x1xf32> to vector<8x16xf32>
    %150 = vector.broadcast %148 : vector<1x16xf32> to vector<8x16xf32>
    %151 = arith.mulf %149, %150 : vector<8x16xf32>
    %152 = arith.addf %105, %151 : vector<8x16xf32>
    %c27 = arith.constant 27 : index
    %153 = memref.load %arg2[%c27] : memref<81xf32, #tpu.memory_space<smem>>
    %154 = vector.broadcast %153 : f32 to vector<8x256xf32>
    %155 = arith.mulf %154, %0 : vector<8x256xf32>
    %c28 = arith.constant 28 : index
    %156 = memref.load %arg2[%c28] : memref<81xf32, #tpu.memory_space<smem>>
    %157 = vector.broadcast %156 : f32 to vector<8x256xf32>
    %158 = arith.mulf %157, %1 : vector<8x256xf32>
    %159 = arith.addf %155, %158 : vector<8x256xf32>
    %c29 = arith.constant 29 : index
    %160 = memref.load %arg2[%c29] : memref<81xf32, #tpu.memory_space<smem>>
    %161 = vector.broadcast %160 : f32 to vector<8x256xf32>
    %162 = arith.mulf %161, %2 : vector<8x256xf32>
    %163 = arith.addf %159, %162 : vector<8x256xf32>
    %c30 = arith.constant 30 : index
    %164 = memref.load %arg2[%c30] : memref<81xf32, #tpu.memory_space<smem>>
    %165 = vector.broadcast %164 : f32 to vector<8x256xf32>
    %166 = arith.mulf %165, %3 : vector<8x256xf32>
    %167 = arith.addf %163, %166 : vector<8x256xf32>
    %c31 = arith.constant 31 : index
    %168 = memref.load %arg2[%c31] : memref<81xf32, #tpu.memory_space<smem>>
    %169 = vector.broadcast %168 : f32 to vector<8x256xf32>
    %170 = arith.mulf %169, %4 : vector<8x256xf32>
    %171 = arith.addf %167, %170 : vector<8x256xf32>
    %c32_22 = arith.constant 32 : index
    %172 = memref.load %arg2[%c32_22] : memref<81xf32, #tpu.memory_space<smem>>
    %173 = vector.broadcast %172 : f32 to vector<8x256xf32>
    %174 = arith.mulf %173, %5 : vector<8x256xf32>
    %175 = arith.addf %171, %174 : vector<8x256xf32>
    %c33 = arith.constant 33 : index
    %176 = memref.load %arg2[%c33] : memref<81xf32, #tpu.memory_space<smem>>
    %177 = vector.broadcast %176 : f32 to vector<8x256xf32>
    %178 = arith.mulf %177, %6 : vector<8x256xf32>
    %179 = arith.addf %175, %178 : vector<8x256xf32>
    %c34 = arith.constant 34 : index
    %180 = memref.load %arg2[%c34] : memref<81xf32, #tpu.memory_space<smem>>
    %181 = vector.broadcast %180 : f32 to vector<8x256xf32>
    %182 = arith.mulf %181, %7 : vector<8x256xf32>
    %183 = arith.addf %179, %182 : vector<8x256xf32>
    %c35 = arith.constant 35 : index
    %184 = memref.load %arg2[%c35] : memref<81xf32, #tpu.memory_space<smem>>
    %185 = vector.broadcast %184 : f32 to vector<8x256xf32>
    %186 = arith.mulf %185, %8 : vector<8x256xf32>
    %187 = arith.addf %183, %186 : vector<8x256xf32>
    %c75 = arith.constant 75 : index
    %188 = memref.load %arg2[%c75] : memref<81xf32, #tpu.memory_space<smem>>
    %189 = vector.broadcast %188 : f32 to vector<8x256xf32>
    %190 = arith.addf %187, %189 : vector<8x256xf32>
    %cst_23 = arith.constant 0.000000e+00 : f32
    %191 = vector.broadcast %cst_23 : f32 to vector<8x256xf32>
    %192 = arith.maximumf %190, %191 : vector<8x256xf32>
    %cst_24 = arith.constant dense<0.000000e+00> : vector<8xf32>
    %193 = vector.multi_reduction <add>, %192, %cst_24 [1] : vector<8x256xf32> to vector<8xf32>
    %194 = vector.shape_cast %193 : vector<8xf32> to vector<8x1xf32>
    %c147 = arith.constant 147 : index
    %c0_25 = arith.constant 0 : index
    %195 = vector.load %arg1[%c147, %c0_25] : memref<160x128xf32, #tpu.memory_space<vmem>>, vector<1x16xf32>
    %196 = vector.broadcast %194 : vector<8x1xf32> to vector<8x16xf32>
    %197 = vector.broadcast %195 : vector<1x16xf32> to vector<8x16xf32>
    %198 = arith.mulf %196, %197 : vector<8x16xf32>
    %199 = arith.addf %152, %198 : vector<8x16xf32>
    %c36 = arith.constant 36 : index
    %200 = memref.load %arg2[%c36] : memref<81xf32, #tpu.memory_space<smem>>
    %201 = vector.broadcast %200 : f32 to vector<8x256xf32>
    %202 = arith.mulf %201, %0 : vector<8x256xf32>
    %c37 = arith.constant 37 : index
    %203 = memref.load %arg2[%c37] : memref<81xf32, #tpu.memory_space<smem>>
    %204 = vector.broadcast %203 : f32 to vector<8x256xf32>
    %205 = arith.mulf %204, %1 : vector<8x256xf32>
    %206 = arith.addf %202, %205 : vector<8x256xf32>
    %c38 = arith.constant 38 : index
    %207 = memref.load %arg2[%c38] : memref<81xf32, #tpu.memory_space<smem>>
    %208 = vector.broadcast %207 : f32 to vector<8x256xf32>
    %209 = arith.mulf %208, %2 : vector<8x256xf32>
    %210 = arith.addf %206, %209 : vector<8x256xf32>
    %c39 = arith.constant 39 : index
    %211 = memref.load %arg2[%c39] : memref<81xf32, #tpu.memory_space<smem>>
    %212 = vector.broadcast %211 : f32 to vector<8x256xf32>
    %213 = arith.mulf %212, %3 : vector<8x256xf32>
    %214 = arith.addf %210, %213 : vector<8x256xf32>
    %c40_26 = arith.constant 40 : index
    %215 = memref.load %arg2[%c40_26] : memref<81xf32, #tpu.memory_space<smem>>
    %216 = vector.broadcast %215 : f32 to vector<8x256xf32>
    %217 = arith.mulf %216, %4 : vector<8x256xf32>
    %218 = arith.addf %214, %217 : vector<8x256xf32>
    %c41 = arith.constant 41 : index
    %219 = memref.load %arg2[%c41] : memref<81xf32, #tpu.memory_space<smem>>
    %220 = vector.broadcast %219 : f32 to vector<8x256xf32>
    %221 = arith.mulf %220, %5 : vector<8x256xf32>
    %222 = arith.addf %218, %221 : vector<8x256xf32>
    %c42 = arith.constant 42 : index
    %223 = memref.load %arg2[%c42] : memref<81xf32, #tpu.memory_space<smem>>
    %224 = vector.broadcast %223 : f32 to vector<8x256xf32>
    %225 = arith.mulf %224, %6 : vector<8x256xf32>
    %226 = arith.addf %222, %225 : vector<8x256xf32>
    %c43 = arith.constant 43 : index
    %227 = memref.load %arg2[%c43] : memref<81xf32, #tpu.memory_space<smem>>
    %228 = vector.broadcast %227 : f32 to vector<8x256xf32>
    %229 = arith.mulf %228, %7 : vector<8x256xf32>
    %230 = arith.addf %226, %229 : vector<8x256xf32>
    %c44 = arith.constant 44 : index
    %231 = memref.load %arg2[%c44] : memref<81xf32, #tpu.memory_space<smem>>
    %232 = vector.broadcast %231 : f32 to vector<8x256xf32>
    %233 = arith.mulf %232, %8 : vector<8x256xf32>
    %234 = arith.addf %230, %233 : vector<8x256xf32>
    %c76 = arith.constant 76 : index
    %235 = memref.load %arg2[%c76] : memref<81xf32, #tpu.memory_space<smem>>
    %236 = vector.broadcast %235 : f32 to vector<8x256xf32>
    %237 = arith.addf %234, %236 : vector<8x256xf32>
    %cst_27 = arith.constant 0.000000e+00 : f32
    %238 = vector.broadcast %cst_27 : f32 to vector<8x256xf32>
    %239 = arith.maximumf %237, %238 : vector<8x256xf32>
    %cst_28 = arith.constant dense<0.000000e+00> : vector<8xf32>
    %240 = vector.multi_reduction <add>, %239, %cst_28 [1] : vector<8x256xf32> to vector<8xf32>
    %241 = vector.shape_cast %240 : vector<8xf32> to vector<8x1xf32>
    %c148 = arith.constant 148 : index
    %c0_29 = arith.constant 0 : index
    %242 = vector.load %arg1[%c148, %c0_29] : memref<160x128xf32, #tpu.memory_space<vmem>>, vector<1x16xf32>
    %243 = vector.broadcast %241 : vector<8x1xf32> to vector<8x16xf32>
    %244 = vector.broadcast %242 : vector<1x16xf32> to vector<8x16xf32>
    %245 = arith.mulf %243, %244 : vector<8x16xf32>
    %246 = arith.addf %199, %245 : vector<8x16xf32>
    %c45 = arith.constant 45 : index
    %247 = memref.load %arg2[%c45] : memref<81xf32, #tpu.memory_space<smem>>
    %248 = vector.broadcast %247 : f32 to vector<8x256xf32>
    %249 = arith.mulf %248, %0 : vector<8x256xf32>
    %c46 = arith.constant 46 : index
    %250 = memref.load %arg2[%c46] : memref<81xf32, #tpu.memory_space<smem>>
    %251 = vector.broadcast %250 : f32 to vector<8x256xf32>
    %252 = arith.mulf %251, %1 : vector<8x256xf32>
    %253 = arith.addf %249, %252 : vector<8x256xf32>
    %c47 = arith.constant 47 : index
    %254 = memref.load %arg2[%c47] : memref<81xf32, #tpu.memory_space<smem>>
    %255 = vector.broadcast %254 : f32 to vector<8x256xf32>
    %256 = arith.mulf %255, %2 : vector<8x256xf32>
    %257 = arith.addf %253, %256 : vector<8x256xf32>
    %c48_30 = arith.constant 48 : index
    %258 = memref.load %arg2[%c48_30] : memref<81xf32, #tpu.memory_space<smem>>
    %259 = vector.broadcast %258 : f32 to vector<8x256xf32>
    %260 = arith.mulf %259, %3 : vector<8x256xf32>
    %261 = arith.addf %257, %260 : vector<8x256xf32>
    %c49 = arith.constant 49 : index
    %262 = memref.load %arg2[%c49] : memref<81xf32, #tpu.memory_space<smem>>
    %263 = vector.broadcast %262 : f32 to vector<8x256xf32>
    %264 = arith.mulf %263, %4 : vector<8x256xf32>
    %265 = arith.addf %261, %264 : vector<8x256xf32>
    %c50 = arith.constant 50 : index
    %266 = memref.load %arg2[%c50] : memref<81xf32, #tpu.memory_space<smem>>
    %267 = vector.broadcast %266 : f32 to vector<8x256xf32>
    %268 = arith.mulf %267, %5 : vector<8x256xf32>
    %269 = arith.addf %265, %268 : vector<8x256xf32>
    %c51 = arith.constant 51 : index
    %270 = memref.load %arg2[%c51] : memref<81xf32, #tpu.memory_space<smem>>
    %271 = vector.broadcast %270 : f32 to vector<8x256xf32>
    %272 = arith.mulf %271, %6 : vector<8x256xf32>
    %273 = arith.addf %269, %272 : vector<8x256xf32>
    %c52 = arith.constant 52 : index
    %274 = memref.load %arg2[%c52] : memref<81xf32, #tpu.memory_space<smem>>
    %275 = vector.broadcast %274 : f32 to vector<8x256xf32>
    %276 = arith.mulf %275, %7 : vector<8x256xf32>
    %277 = arith.addf %273, %276 : vector<8x256xf32>
    %c53 = arith.constant 53 : index
    %278 = memref.load %arg2[%c53] : memref<81xf32, #tpu.memory_space<smem>>
    %279 = vector.broadcast %278 : f32 to vector<8x256xf32>
    %280 = arith.mulf %279, %8 : vector<8x256xf32>
    %281 = arith.addf %277, %280 : vector<8x256xf32>
    %c77 = arith.constant 77 : index
    %282 = memref.load %arg2[%c77] : memref<81xf32, #tpu.memory_space<smem>>
    %283 = vector.broadcast %282 : f32 to vector<8x256xf32>
    %284 = arith.addf %281, %283 : vector<8x256xf32>
    %cst_31 = arith.constant 0.000000e+00 : f32
    %285 = vector.broadcast %cst_31 : f32 to vector<8x256xf32>
    %286 = arith.maximumf %284, %285 : vector<8x256xf32>
    %cst_32 = arith.constant dense<0.000000e+00> : vector<8xf32>
    %287 = vector.multi_reduction <add>, %286, %cst_32 [1] : vector<8x256xf32> to vector<8xf32>
    %288 = vector.shape_cast %287 : vector<8xf32> to vector<8x1xf32>
    %c149 = arith.constant 149 : index
    %c0_33 = arith.constant 0 : index
    %289 = vector.load %arg1[%c149, %c0_33] : memref<160x128xf32, #tpu.memory_space<vmem>>, vector<1x16xf32>
    %290 = vector.broadcast %288 : vector<8x1xf32> to vector<8x16xf32>
    %291 = vector.broadcast %289 : vector<1x16xf32> to vector<8x16xf32>
    %292 = arith.mulf %290, %291 : vector<8x16xf32>
    %293 = arith.addf %246, %292 : vector<8x16xf32>
    %c54 = arith.constant 54 : index
    %294 = memref.load %arg2[%c54] : memref<81xf32, #tpu.memory_space<smem>>
    %295 = vector.broadcast %294 : f32 to vector<8x256xf32>
    %296 = arith.mulf %295, %0 : vector<8x256xf32>
    %c55 = arith.constant 55 : index
    %297 = memref.load %arg2[%c55] : memref<81xf32, #tpu.memory_space<smem>>
    %298 = vector.broadcast %297 : f32 to vector<8x256xf32>
    %299 = arith.mulf %298, %1 : vector<8x256xf32>
    %300 = arith.addf %296, %299 : vector<8x256xf32>
    %c56_34 = arith.constant 56 : index
    %301 = memref.load %arg2[%c56_34] : memref<81xf32, #tpu.memory_space<smem>>
    %302 = vector.broadcast %301 : f32 to vector<8x256xf32>
    %303 = arith.mulf %302, %2 : vector<8x256xf32>
    %304 = arith.addf %300, %303 : vector<8x256xf32>
    %c57 = arith.constant 57 : index
    %305 = memref.load %arg2[%c57] : memref<81xf32, #tpu.memory_space<smem>>
    %306 = vector.broadcast %305 : f32 to vector<8x256xf32>
    %307 = arith.mulf %306, %3 : vector<8x256xf32>
    %308 = arith.addf %304, %307 : vector<8x256xf32>
    %c58 = arith.constant 58 : index
    %309 = memref.load %arg2[%c58] : memref<81xf32, #tpu.memory_space<smem>>
    %310 = vector.broadcast %309 : f32 to vector<8x256xf32>
    %311 = arith.mulf %310, %4 : vector<8x256xf32>
    %312 = arith.addf %308, %311 : vector<8x256xf32>
    %c59 = arith.constant 59 : index
    %313 = memref.load %arg2[%c59] : memref<81xf32, #tpu.memory_space<smem>>
    %314 = vector.broadcast %313 : f32 to vector<8x256xf32>
    %315 = arith.mulf %314, %5 : vector<8x256xf32>
    %316 = arith.addf %312, %315 : vector<8x256xf32>
    %c60 = arith.constant 60 : index
    %317 = memref.load %arg2[%c60] : memref<81xf32, #tpu.memory_space<smem>>
    %318 = vector.broadcast %317 : f32 to vector<8x256xf32>
    %319 = arith.mulf %318, %6 : vector<8x256xf32>
    %320 = arith.addf %316, %319 : vector<8x256xf32>
    %c61 = arith.constant 61 : index
    %321 = memref.load %arg2[%c61] : memref<81xf32, #tpu.memory_space<smem>>
    %322 = vector.broadcast %321 : f32 to vector<8x256xf32>
    %323 = arith.mulf %322, %7 : vector<8x256xf32>
    %324 = arith.addf %320, %323 : vector<8x256xf32>
    %c62 = arith.constant 62 : index
    %325 = memref.load %arg2[%c62] : memref<81xf32, #tpu.memory_space<smem>>
    %326 = vector.broadcast %325 : f32 to vector<8x256xf32>
    %327 = arith.mulf %326, %8 : vector<8x256xf32>
    %328 = arith.addf %324, %327 : vector<8x256xf32>
    %c78 = arith.constant 78 : index
    %329 = memref.load %arg2[%c78] : memref<81xf32, #tpu.memory_space<smem>>
    %330 = vector.broadcast %329 : f32 to vector<8x256xf32>
    %331 = arith.addf %328, %330 : vector<8x256xf32>
    %cst_35 = arith.constant 0.000000e+00 : f32
    %332 = vector.broadcast %cst_35 : f32 to vector<8x256xf32>
    %333 = arith.maximumf %331, %332 : vector<8x256xf32>
    %cst_36 = arith.constant dense<0.000000e+00> : vector<8xf32>
    %334 = vector.multi_reduction <add>, %333, %cst_36 [1] : vector<8x256xf32> to vector<8xf32>
    %335 = vector.shape_cast %334 : vector<8xf32> to vector<8x1xf32>
    %c150 = arith.constant 150 : index
    %c0_37 = arith.constant 0 : index
    %336 = vector.load %arg1[%c150, %c0_37] : memref<160x128xf32, #tpu.memory_space<vmem>>, vector<1x16xf32>
    %337 = vector.broadcast %335 : vector<8x1xf32> to vector<8x16xf32>
    %338 = vector.broadcast %336 : vector<1x16xf32> to vector<8x16xf32>
    %339 = arith.mulf %337, %338 : vector<8x16xf32>
    %340 = arith.addf %293, %339 : vector<8x16xf32>
    %c63 = arith.constant 63 : index
    %341 = memref.load %arg2[%c63] : memref<81xf32, #tpu.memory_space<smem>>
    %342 = vector.broadcast %341 : f32 to vector<8x256xf32>
    %343 = arith.mulf %342, %0 : vector<8x256xf32>
    %c64_38 = arith.constant 64 : index
    %344 = memref.load %arg2[%c64_38] : memref<81xf32, #tpu.memory_space<smem>>
    %345 = vector.broadcast %344 : f32 to vector<8x256xf32>
    %346 = arith.mulf %345, %1 : vector<8x256xf32>
    %347 = arith.addf %343, %346 : vector<8x256xf32>
    %c65 = arith.constant 65 : index
    %348 = memref.load %arg2[%c65] : memref<81xf32, #tpu.memory_space<smem>>
    %349 = vector.broadcast %348 : f32 to vector<8x256xf32>
    %350 = arith.mulf %349, %2 : vector<8x256xf32>
    %351 = arith.addf %347, %350 : vector<8x256xf32>
    %c66 = arith.constant 66 : index
    %352 = memref.load %arg2[%c66] : memref<81xf32, #tpu.memory_space<smem>>
    %353 = vector.broadcast %352 : f32 to vector<8x256xf32>
    %354 = arith.mulf %353, %3 : vector<8x256xf32>
    %355 = arith.addf %351, %354 : vector<8x256xf32>
    %c67 = arith.constant 67 : index
    %356 = memref.load %arg2[%c67] : memref<81xf32, #tpu.memory_space<smem>>
    %357 = vector.broadcast %356 : f32 to vector<8x256xf32>
    %358 = arith.mulf %357, %4 : vector<8x256xf32>
    %359 = arith.addf %355, %358 : vector<8x256xf32>
    %c68 = arith.constant 68 : index
    %360 = memref.load %arg2[%c68] : memref<81xf32, #tpu.memory_space<smem>>
    %361 = vector.broadcast %360 : f32 to vector<8x256xf32>
    %362 = arith.mulf %361, %5 : vector<8x256xf32>
    %363 = arith.addf %359, %362 : vector<8x256xf32>
    %c69 = arith.constant 69 : index
    %364 = memref.load %arg2[%c69] : memref<81xf32, #tpu.memory_space<smem>>
    %365 = vector.broadcast %364 : f32 to vector<8x256xf32>
    %366 = arith.mulf %365, %6 : vector<8x256xf32>
    %367 = arith.addf %363, %366 : vector<8x256xf32>
    %c70 = arith.constant 70 : index
    %368 = memref.load %arg2[%c70] : memref<81xf32, #tpu.memory_space<smem>>
    %369 = vector.broadcast %368 : f32 to vector<8x256xf32>
    %370 = arith.mulf %369, %7 : vector<8x256xf32>
    %371 = arith.addf %367, %370 : vector<8x256xf32>
    %c71 = arith.constant 71 : index
    %372 = memref.load %arg2[%c71] : memref<81xf32, #tpu.memory_space<smem>>
    %373 = vector.broadcast %372 : f32 to vector<8x256xf32>
    %374 = arith.mulf %373, %8 : vector<8x256xf32>
    %375 = arith.addf %371, %374 : vector<8x256xf32>
    %c79 = arith.constant 79 : index
    %376 = memref.load %arg2[%c79] : memref<81xf32, #tpu.memory_space<smem>>
    %377 = vector.broadcast %376 : f32 to vector<8x256xf32>
    %378 = arith.addf %375, %377 : vector<8x256xf32>
    %cst_39 = arith.constant 0.000000e+00 : f32
    %379 = vector.broadcast %cst_39 : f32 to vector<8x256xf32>
    %380 = arith.maximumf %378, %379 : vector<8x256xf32>
    %cst_40 = arith.constant dense<0.000000e+00> : vector<8xf32>
    %381 = vector.multi_reduction <add>, %380, %cst_40 [1] : vector<8x256xf32> to vector<8xf32>
    %382 = vector.shape_cast %381 : vector<8xf32> to vector<8x1xf32>
    %c151 = arith.constant 151 : index
    %c0_41 = arith.constant 0 : index
    %383 = vector.load %arg1[%c151, %c0_41] : memref<160x128xf32, #tpu.memory_space<vmem>>, vector<1x16xf32>
    %384 = vector.broadcast %382 : vector<8x1xf32> to vector<8x16xf32>
    %385 = vector.broadcast %383 : vector<1x16xf32> to vector<8x16xf32>
    %386 = arith.mulf %384, %385 : vector<8x16xf32>
    %387 = arith.addf %340, %386 : vector<8x16xf32>
    %cst_42 = arith.constant 0.000000e+00 : f32
    %388 = vector.broadcast %cst_42 : f32 to vector<8x16xf32>
    %389 = arith.maximumf %387, %388 : vector<8x16xf32>
    %c0_43 = arith.constant 0 : index
    %c0_44 = arith.constant 0 : index
    %390 = vector.load %arg1[%c0_43, %c0_44] : memref<160x128xf32, #tpu.memory_space<vmem>>, vector<16x128xf32>
    %c152 = arith.constant 152 : index
    %c0_45 = arith.constant 0 : index
    %391 = vector.load %arg1[%c152, %c0_45] : memref<160x128xf32, #tpu.memory_space<vmem>>, vector<1x128xf32>
    %cst_46 = arith.constant dense<0.000000e+00> : vector<8x128xf32>
    %392 = tpu.matmul %389, %390, %cst_46 {dimension_numbers = #tpu.dot_dimension_numbers<[1], [0], [0], [1], [0, 0, 1, 1], [], []>} : vector<8x16xf32>, vector<16x128xf32>, vector<8x128xf32> -> vector<8x128xf32>
    %393 = vector.broadcast %391 : vector<1x128xf32> to vector<8x128xf32>
    %394 = arith.addf %392, %393 : vector<8x128xf32>
    %395 = vector.extract_strided_slice %394 {offsets = [0, 0], sizes = [1, 128], strides = [1, 1]} : vector<8x128xf32> to vector<1x128xf32>
    %396 = vector.extract_strided_slice %394 {offsets = [4, 0], sizes = [1, 128], strides = [1, 1]} : vector<8x128xf32> to vector<1x128xf32>
    %397 = vector.extract_strided_slice %394 {offsets = [1, 0], sizes = [1, 128], strides = [1, 1]} : vector<8x128xf32> to vector<1x128xf32>
    %398 = vector.extract_strided_slice %394 {offsets = [5, 0], sizes = [1, 128], strides = [1, 1]} : vector<8x128xf32> to vector<1x128xf32>
    %399 = vector.extract_strided_slice %394 {offsets = [2, 0], sizes = [1, 128], strides = [1, 1]} : vector<8x128xf32> to vector<1x128xf32>
    %400 = vector.extract_strided_slice %394 {offsets = [6, 0], sizes = [1, 128], strides = [1, 1]} : vector<8x128xf32> to vector<1x128xf32>
    %401 = vector.extract_strided_slice %394 {offsets = [3, 0], sizes = [1, 128], strides = [1, 1]} : vector<8x128xf32> to vector<1x128xf32>
    %402 = vector.extract_strided_slice %394 {offsets = [7, 0], sizes = [1, 128], strides = [1, 1]} : vector<8x128xf32> to vector<1x128xf32>
    %403 = tpu.concatenate %395, %396, %397, %398, %399, %400, %401, %402 in 0 : vector<1x128xf32>, vector<1x128xf32>, vector<1x128xf32>, vector<1x128xf32>, vector<1x128xf32>, vector<1x128xf32>, vector<1x128xf32>, vector<1x128xf32> -> vector<8x128xf32>
    %c16_47 = arith.constant 16 : index
    %c0_48 = arith.constant 0 : index
    %404 = vector.load %arg1[%c16_47, %c0_48] : memref<160x128xf32, #tpu.memory_space<vmem>>, vector<32x128xf32>
    %405 = tpu.iota {dimensions = array<i32: 1>} : vector<2x128xi32>
    %c64_i32 = arith.constant 64 : i32
    %406 = vector.broadcast %c64_i32 : i32 to vector<2x128xi32>
    %407 = arith.cmpi sge, %405, %406 : vector<2x128xi32>
    %c96_i32 = arith.constant 96 : i32
    %408 = vector.broadcast %c96_i32 : i32 to vector<2x128xi32>
    %409 = arith.cmpi slt, %405, %408 : vector<2x128xi32>
    %410 = arith.andi %407, %409 : vector<2x128xi1>
    %cst_49 = arith.constant 0.000000e+00 : f32
    %411 = vector.broadcast %cst_49 : f32 to vector<2x32xf32>
    %cst_50 = arith.constant 0.000000e+00 : f32
    %412 = vector.broadcast %cst_50 : f32 to vector<2x32xf32>
    %413 = vector.extract_strided_slice %403 {offsets = [0, 0], sizes = [2, 128], strides = [1, 1]} : vector<8x128xf32> to vector<2x128xf32>
    %cst_51 = arith.constant dense<0.000000e+00> : vector<2x128xf32>
    %414 = tpu.matmul %411, %404, %cst_51 {dimension_numbers = #tpu.dot_dimension_numbers<[1], [0], [0], [1], [0, 0, 1, 1], [], []>} : vector<2x32xf32>, vector<32x128xf32>, vector<2x128xf32> -> vector<2x128xf32>
    %415 = arith.addf %413, %414 : vector<2x128xf32>
    %416 = math.tanh %415 : vector<2x128xf32>
    %417 = arith.negf %415 : vector<2x128xf32>
    %418 = math.exp %417 : vector<2x128xf32>
    %cst_52 = arith.constant 1.000000e+00 : f32
    %419 = vector.broadcast %cst_52 : f32 to vector<2x128xf32>
    %420 = arith.addf %419, %418 : vector<2x128xf32>
    %421 = arith.divf %419, %420 : vector<2x128xf32>
    %422 = arith.select %410, %416, %421 : vector<2x128xi1>, vector<2x128xf32>
    %423 = vector.extract_strided_slice %422 {offsets = [0, 0], sizes = [2, 32], strides = [1, 1]} : vector<2x128xf32> to vector<2x32xf32>
    %424 = vector.extract_strided_slice %422 {offsets = [0, 32], sizes = [2, 32], strides = [1, 1]} : vector<2x128xf32> to vector<2x32xf32>
    %425 = vector.extract_strided_slice %422 {offsets = [0, 64], sizes = [2, 32], strides = [1, 1]} : vector<2x128xf32> to vector<2x32xf32>
    %426 = vector.extract_strided_slice %422 {offsets = [0, 96], sizes = [2, 32], strides = [1, 1]} : vector<2x128xf32> to vector<2x32xf32>
    %427 = arith.mulf %424, %412 : vector<2x32xf32>
    %428 = arith.mulf %423, %425 : vector<2x32xf32>
    %429 = arith.addf %427, %428 : vector<2x32xf32>
    %430 = math.tanh %429 : vector<2x32xf32>
    %431 = arith.mulf %426, %430 : vector<2x32xf32>
    %432 = vector.extract_strided_slice %403 {offsets = [2, 0], sizes = [2, 128], strides = [1, 1]} : vector<8x128xf32> to vector<2x128xf32>
    %cst_53 = arith.constant dense<0.000000e+00> : vector<2x128xf32>
    %433 = tpu.matmul %431, %404, %cst_53 {dimension_numbers = #tpu.dot_dimension_numbers<[1], [0], [0], [1], [0, 0, 1, 1], [], []>} : vector<2x32xf32>, vector<32x128xf32>, vector<2x128xf32> -> vector<2x128xf32>
    %434 = arith.addf %432, %433 : vector<2x128xf32>
    %435 = math.tanh %434 : vector<2x128xf32>
    %436 = arith.negf %434 : vector<2x128xf32>
    %437 = math.exp %436 : vector<2x128xf32>
    %cst_54 = arith.constant 1.000000e+00 : f32
    %438 = vector.broadcast %cst_54 : f32 to vector<2x128xf32>
    %439 = arith.addf %438, %437 : vector<2x128xf32>
    %440 = arith.divf %438, %439 : vector<2x128xf32>
    %441 = arith.select %410, %435, %440 : vector<2x128xi1>, vector<2x128xf32>
    %442 = vector.extract_strided_slice %441 {offsets = [0, 0], sizes = [2, 32], strides = [1, 1]} : vector<2x128xf32> to vector<2x32xf32>
    %443 = vector.extract_strided_slice %441 {offsets = [0, 32], sizes = [2, 32], strides = [1, 1]} : vector<2x128xf32> to vector<2x32xf32>
    %444 = vector.extract_strided_slice %441 {offsets = [0, 64], sizes = [2, 32], strides = [1, 1]} : vector<2x128xf32> to vector<2x32xf32>
    %445 = vector.extract_strided_slice %441 {offsets = [0, 96], sizes = [2, 32], strides = [1, 1]} : vector<2x128xf32> to vector<2x32xf32>
    %446 = arith.mulf %443, %429 : vector<2x32xf32>
    %447 = arith.mulf %442, %444 : vector<2x32xf32>
    %448 = arith.addf %446, %447 : vector<2x32xf32>
    %449 = math.tanh %448 : vector<2x32xf32>
    %450 = arith.mulf %445, %449 : vector<2x32xf32>
    %451 = vector.extract_strided_slice %403 {offsets = [4, 0], sizes = [2, 128], strides = [1, 1]} : vector<8x128xf32> to vector<2x128xf32>
    %cst_55 = arith.constant dense<0.000000e+00> : vector<2x128xf32>
    %452 = tpu.matmul %450, %404, %cst_55 {dimension_numbers = #tpu.dot_dimension_numbers<[1], [0], [0], [1], [0, 0, 1, 1], [], []>} : vector<2x32xf32>, vector<32x128xf32>, vector<2x128xf32> -> vector<2x128xf32>
    %453 = arith.addf %451, %452 : vector<2x128xf32>
    %454 = math.tanh %453 : vector<2x128xf32>
    %455 = arith.negf %453 : vector<2x128xf32>
    %456 = math.exp %455 : vector<2x128xf32>
    %cst_56 = arith.constant 1.000000e+00 : f32
    %457 = vector.broadcast %cst_56 : f32 to vector<2x128xf32>
    %458 = arith.addf %457, %456 : vector<2x128xf32>
    %459 = arith.divf %457, %458 : vector<2x128xf32>
    %460 = arith.select %410, %454, %459 : vector<2x128xi1>, vector<2x128xf32>
    %461 = vector.extract_strided_slice %460 {offsets = [0, 0], sizes = [2, 32], strides = [1, 1]} : vector<2x128xf32> to vector<2x32xf32>
    %462 = vector.extract_strided_slice %460 {offsets = [0, 32], sizes = [2, 32], strides = [1, 1]} : vector<2x128xf32> to vector<2x32xf32>
    %463 = vector.extract_strided_slice %460 {offsets = [0, 64], sizes = [2, 32], strides = [1, 1]} : vector<2x128xf32> to vector<2x32xf32>
    %464 = vector.extract_strided_slice %460 {offsets = [0, 96], sizes = [2, 32], strides = [1, 1]} : vector<2x128xf32> to vector<2x32xf32>
    %465 = arith.mulf %462, %448 : vector<2x32xf32>
    %466 = arith.mulf %461, %463 : vector<2x32xf32>
    %467 = arith.addf %465, %466 : vector<2x32xf32>
    %468 = math.tanh %467 : vector<2x32xf32>
    %469 = arith.mulf %464, %468 : vector<2x32xf32>
    %470 = vector.extract_strided_slice %403 {offsets = [6, 0], sizes = [2, 128], strides = [1, 1]} : vector<8x128xf32> to vector<2x128xf32>
    %cst_57 = arith.constant dense<0.000000e+00> : vector<2x128xf32>
    %471 = tpu.matmul %469, %404, %cst_57 {dimension_numbers = #tpu.dot_dimension_numbers<[1], [0], [0], [1], [0, 0, 1, 1], [], []>} : vector<2x32xf32>, vector<32x128xf32>, vector<2x128xf32> -> vector<2x128xf32>
    %472 = arith.addf %470, %471 : vector<2x128xf32>
    %473 = math.tanh %472 : vector<2x128xf32>
    %474 = arith.negf %472 : vector<2x128xf32>
    %475 = math.exp %474 : vector<2x128xf32>
    %cst_58 = arith.constant 1.000000e+00 : f32
    %476 = vector.broadcast %cst_58 : f32 to vector<2x128xf32>
    %477 = arith.addf %476, %475 : vector<2x128xf32>
    %478 = arith.divf %476, %477 : vector<2x128xf32>
    %479 = arith.select %410, %473, %478 : vector<2x128xi1>, vector<2x128xf32>
    %480 = vector.extract_strided_slice %479 {offsets = [0, 0], sizes = [2, 32], strides = [1, 1]} : vector<2x128xf32> to vector<2x32xf32>
    %481 = vector.extract_strided_slice %479 {offsets = [0, 32], sizes = [2, 32], strides = [1, 1]} : vector<2x128xf32> to vector<2x32xf32>
    %482 = vector.extract_strided_slice %479 {offsets = [0, 64], sizes = [2, 32], strides = [1, 1]} : vector<2x128xf32> to vector<2x32xf32>
    %483 = vector.extract_strided_slice %479 {offsets = [0, 96], sizes = [2, 32], strides = [1, 1]} : vector<2x128xf32> to vector<2x32xf32>
    %484 = arith.mulf %481, %467 : vector<2x32xf32>
    %485 = arith.mulf %480, %482 : vector<2x32xf32>
    %486 = arith.addf %484, %485 : vector<2x32xf32>
    %487 = math.tanh %486 : vector<2x32xf32>
    %488 = arith.mulf %483, %487 : vector<2x32xf32>
    %489 = vector.extract_strided_slice %431 {offsets = [0, 0], sizes = [1, 32], strides = [1, 1]} : vector<2x32xf32> to vector<1x32xf32>
    %490 = vector.extract_strided_slice %450 {offsets = [0, 0], sizes = [1, 32], strides = [1, 1]} : vector<2x32xf32> to vector<1x32xf32>
    %491 = vector.extract_strided_slice %469 {offsets = [0, 0], sizes = [1, 32], strides = [1, 1]} : vector<2x32xf32> to vector<1x32xf32>
    %492 = vector.extract_strided_slice %488 {offsets = [0, 0], sizes = [1, 32], strides = [1, 1]} : vector<2x32xf32> to vector<1x32xf32>
    %493 = vector.extract_strided_slice %431 {offsets = [1, 0], sizes = [1, 32], strides = [1, 1]} : vector<2x32xf32> to vector<1x32xf32>
    %494 = vector.extract_strided_slice %450 {offsets = [1, 0], sizes = [1, 32], strides = [1, 1]} : vector<2x32xf32> to vector<1x32xf32>
    %495 = vector.extract_strided_slice %469 {offsets = [1, 0], sizes = [1, 32], strides = [1, 1]} : vector<2x32xf32> to vector<1x32xf32>
    %496 = vector.extract_strided_slice %488 {offsets = [1, 0], sizes = [1, 32], strides = [1, 1]} : vector<2x32xf32> to vector<1x32xf32>
    %497 = tpu.concatenate %489, %490, %491, %492, %493, %494, %495, %496 in 0 : vector<1x32xf32>, vector<1x32xf32>, vector<1x32xf32>, vector<1x32xf32>, vector<1x32xf32>, vector<1x32xf32>, vector<1x32xf32>, vector<1x32xf32> -> vector<8x32xf32>
    %c48_59 = arith.constant 48 : index
    %c0_60 = arith.constant 0 : index
    %498 = vector.load %arg1[%c48_59, %c0_60] : memref<160x128xf32, #tpu.memory_space<vmem>>, vector<32x128xf32>
    %c154 = arith.constant 154 : index
    %c0_61 = arith.constant 0 : index
    %499 = vector.load %arg1[%c154, %c0_61] : memref<160x128xf32, #tpu.memory_space<vmem>>, vector<1x128xf32>
    %cst_62 = arith.constant dense<0.000000e+00> : vector<8x128xf32>
    %500 = tpu.matmul %497, %498, %cst_62 {dimension_numbers = #tpu.dot_dimension_numbers<[1], [0], [0], [1], [0, 0, 1, 1], [], []>} : vector<8x32xf32>, vector<32x128xf32>, vector<8x128xf32> -> vector<8x128xf32>
    %501 = vector.broadcast %499 : vector<1x128xf32> to vector<8x128xf32>
    %502 = arith.addf %500, %501 : vector<8x128xf32>
    %cst_63 = arith.constant 0.000000e+00 : f32
    %503 = vector.broadcast %cst_63 : f32 to vector<8x128xf32>
    %504 = arith.maximumf %502, %503 : vector<8x128xf32>
    %c80 = arith.constant 80 : index
    %c0_64 = arith.constant 0 : index
    %505 = vector.load %arg1[%c80, %c0_64] : memref<160x128xf32, #tpu.memory_space<vmem>>, vector<64x128xf32>
    %c155 = arith.constant 155 : index
    %c0_65 = arith.constant 0 : index
    %506 = vector.load %arg1[%c155, %c0_65] : memref<160x128xf32, #tpu.memory_space<vmem>>, vector<1x128xf32>
    %507 = vector.extract_strided_slice %504 {offsets = [0, 0], sizes = [8, 64], strides = [1, 1]} : vector<8x128xf32> to vector<8x64xf32>
    %cst_66 = arith.constant dense<0.000000e+00> : vector<8x128xf32>
    %508 = tpu.matmul %507, %505, %cst_66 {dimension_numbers = #tpu.dot_dimension_numbers<[1], [0], [0], [1], [0, 0, 1, 1], [], []>} : vector<8x64xf32>, vector<64x128xf32>, vector<8x128xf32> -> vector<8x128xf32>
    %509 = vector.broadcast %506 : vector<1x128xf32> to vector<8x128xf32>
    %510 = arith.addf %508, %509 : vector<8x128xf32>
    %cst_67 = arith.constant 0.000000e+00 : f32
    %511 = vector.broadcast %cst_67 : f32 to vector<8x128xf32>
    %512 = arith.maximumf %510, %511 : vector<8x128xf32>
    %c156 = arith.constant 156 : index
    %c0_68 = arith.constant 0 : index
    %513 = vector.load %arg1[%c156, %c0_68] : memref<160x128xf32, #tpu.memory_space<vmem>>, vector<1x128xf32>
    %514 = vector.broadcast %513 : vector<1x128xf32> to vector<8x128xf32>
    %515 = arith.mulf %512, %514 : vector<8x128xf32>
    %cst_69 = arith.constant dense<0.000000e+00> : vector<8xf32>
    %516 = vector.multi_reduction <add>, %515, %cst_69 [1] : vector<8x128xf32> to vector<8xf32>
    %517 = vector.shape_cast %516 : vector<8xf32> to vector<8x1xf32>
    %c80_70 = arith.constant 80 : index
    %518 = memref.load %arg2[%c80_70] : memref<81xf32, #tpu.memory_space<smem>>
    %519 = vector.broadcast %518 : f32 to vector<8x1xf32>
    %520 = arith.addf %517, %519 : vector<8x1xf32>
    %c0_71 = arith.constant 0 : index
    %c0_72 = arith.constant 0 : index
    %521 = vector.load %arg3[%c0_71, %c0_72] : memref<8x1xf32, #tpu.memory_space<vmem>>, vector<8x1xf32>
    tpu.vector_store %arg3[%c0_71, %c0_72], %520 {strides = array<i32>} : memref<8x1xf32, #tpu.memory_space<vmem>>, vector<8x1xf32>,
    return
  }
}

</mosaic_0001>

<llo_original>
// kernel: image_critic_forward.1
$region0: #{image_critic_forward.1}
  #allocation0 [shape = 'u32[]', space=smem, size = 0x4, offset = 0x4, fixed_abs, tag = 'smem constant byte address 0x4 - core index']
  #allocation1 [shape = 'u32[144,128]{1,0:T(1,128)}', space=vmem, size = 0x12000, scoped, tag = 'internal scratch']
  %s0 = inlined_call_operand.vmem [shape: f32[72,256], index: 0, kind: input, shape index: {}]
  %s1 = inlined_call_operand.vmem [shape: f32[160,128], index: 1, kind: input, shape index: {}]
  %s2 = inlined_call_operand.vmem [shape: f32[81], index: 2, kind: input, shape index: {}]
  %s3 = inlined_call_operand.vmem [shape: f32[8,1], index: 3, kind: output, shape index: {}]
  %s4 = sld [smem:[#allocation0]]
  $region26: #{image_critic_forward.1} parent=0
    _
  %s6 = ssub.s32 1, %s4
  %s7 = scalar_select 0, %s6, %s4
  $region1: #{image_critic_forward.1} parent=0
    #allocation2 [shape = 'u8[512]{0}', space=smem, size = 0x200, scoped, tag = 'input window, operand 2, single buffered']
    #allocation3 [shape = 's32[1]{0}', space=sflag, size = 0x4, scoped, tag = 'scoped memory for image_critic_forward.1']
    %8 = vsyncpa [#allocation3], 0
    // Predicated region
    $region2: #{image_critic_forward.1} parent=1 // pred_check
      _
    $region3: #{image_critic_forward.1} parent=1 // pred_check_branch
      %10 = sbr.rel (0) target = $region5
    $region4: #{image_critic_forward.1} parent=1 // pred_region
      _
    $region5: #{image_critic_forward.1} parent=1 // pred_fallthru
      _
    // Predicated region
    $region6: #{image_critic_forward.1} parent=1 // pred_check
      _
    $region7: #{image_critic_forward.1} parent=1 // pred_check_branch
      %12 = sbr.rel (0) target = $region9
    $region8: #{image_critic_forward.1} parent=1 // pred_region
      _
    $region9: #{image_critic_forward.1} parent=1 // pred_fallthru
      _
    // Predicated region
    $region10: #{image_critic_forward.1} parent=1 // pred_check
      _
    $region11: #{image_critic_forward.1} parent=1 // pred_check_branch
      %14 = sbr.rel (0) target = $region13
    $region12: #{image_critic_forward.1} parent=1 // pred_region
      %s16 = ssub.s32 16, 16
      %17 = vsyncadd [#allocation3], %s16
      %s19 = sshll.u32 %s2, 4
      %s20 = int_to_ptr.vmem [resolvable:$true] %s19
      %22 = dma.vmem_to_smem %s20, 16, [#allocation2], [#allocation3]
    $region13: #{image_critic_forward.1} parent=1 // pred_fallthru
      _
    // Predicated region
    $region14: #{image_critic_forward.1} parent=1 // pred_check
      _
    $region15: #{image_critic_forward.1} parent=1 // pred_check_branch
      %24 = sbr.rel (0) target = $region17
    $region16: #{image_critic_forward.1} parent=1 // pred_region
      %25 = dma.done [#allocation3], 16
    $region17: #{image_critic_forward.1} parent=1 // pred_fallthru
      _
    %26 = sfence
    %v27 = vld [vmem:[%s0] sm:$0xff]
    %v28 = vld [vmem:[%s0 + $0x8] sm:$0xff]
    %v29 = vld [vmem:[%s0 + $0x10] sm:$0xff]
    %v30 = vld [vmem:[%s0 + $0x18] sm:$0xff]
    %v31 = vld [vmem:[%s0 + $0x20] sm:$0xff]
    %v32 = vld [vmem:[%s0 + $0x28] sm:$0xff]
    %v33 = vld [vmem:[%s0 + $0x30] sm:$0xff]
    %v34 = vld [vmem:[%s0 + $0x38] sm:$0xff]
    %v35 = vld [vmem:[%s0 + $0x40] sm:$0xff]
    %v36 = vld [vmem:[%s0 + $0x48] sm:$0xff]
    %v37 = vld [vmem:[%s0 + $0x50] sm:$0xff]
    %v38 = vld [vmem:[%s0 + $0x58] sm:$0xff]
    %v39 = vld [vmem:[%s0 + $0x60] sm:$0xff]
    %v40 = vld [vmem:[%s0 + $0x68] sm:$0xff]
    %v41 = vld [vmem:[%s0 + $0x70] sm:$0xff]
    %v42 = vld [vmem:[%s0 + $0x78] sm:$0xff]
    %v43 = vld [vmem:[%s0 + $0x80] sm:$0xff]
    %v44 = vld [vmem:[%s0 + $0x88] sm:$0xff]
    %v45 = vld [vmem:[%s1 + $0x99] sm:$0x1]
    %v46 = vlaneseq
    %v47 = vshrl.u32 %v46, 7
    %v48 = vsub.s32 0, %v47
    %v49 = vrot.slane %v45, %v48
    %s50 = sld [smem:[#allocation2]]
    %v51 = vstv %s50
    %v52 = vmul.f32 %v51, %v27
    %v53 = vmul.f32 %v51, %v28
    %s54 = sld [smem:[#allocation2 + $0x1]]
    %v55 = vstv %s54
    %v56 = vmul.f32 %v55, %v29
    %v57 = vmul.f32 %v55, %v30
    %v58 = vadd.f32 %v52, %v56
    %v59 = vadd.f32 %v53, %v57
    %s60 = sld [smem:[#allocation2 + $0x2]]
    %v61 = vstv %s60
    %v62 = vmul.f32 %v61, %v31
    %v63 = vmul.f32 %v61, %v32
    %v64 = vadd.f32 %v58, %v62
    %v65 = vadd.f32 %v59, %v63
    %s66 = sld [smem:[#allocation2 + $0x3]]
    %v67 = vstv %s66
    %v68 = vmul.f32 %v67, %v33
    %v69 = vmul.f32 %v67, %v34
    %v70 = vadd.f32 %v64, %v68
    %v71 = vadd.f32 %v65, %v69
    %s72 = sld [smem:[#allocation2 + $0x4]]
    %v73 = vstv %s72
    %v74 = vmul.f32 %v73, %v35
    %v75 = vmul.f32 %v73, %v36
    %v76 = vadd.f32 %v70, %v74
    %v77 = vadd.f32 %v71, %v75
    %s78 = sld [smem:[#allocation2 + $0x5]]
    %v79 = vstv %s78
    %v80 = vmul.f32 %v79, %v37
    %v81 = vmul.f32 %v79, %v38
    %v82 = vadd.f32 %v76, %v80
    %v83 = vadd.f32 %v77, %v81
    %s84 = sld [smem:[#allocation2 + $0x6]]
    %v85 = vstv %s84
    %v86 = vmul.f32 %v85, %v39
    %v87 = vmul.f32 %v85, %v40
    %v88 = vadd.f32 %v82, %v86
    %v89 = vadd.f32 %v83, %v87
    %s90 = sld [smem:[#allocation2 + $0x7]]
    %v91 = vstv %s90
    %v92 = vmul.f32 %v91, %v41
    %v93 = vmul.f32 %v91, %v42
    %v94 = vadd.f32 %v88, %v92
    %v95 = vadd.f32 %v89, %v93
    %s96 = sld [smem:[#allocation2 + $0x8]]
    %v97 = vstv %s96
    %v98 = vmul.f32 %v97, %v43
    %v99 = vmul.f32 %v97, %v44
    %v100 = vadd.f32 %v94, %v98
    %v101 = vadd.f32 %v95, %v99
    %s102 = sld [smem:[#allocation2 + $0x48]]
    %v103 = vstv %s102
    %v104 = vadd.f32 %v100, %v103
    %v105 = vadd.f32 %v101, %v103
    %v106 = vmax.f32 %v104, 0.0
    %v107 = vmax.f32 %v105, 0.0
    %v108 = vadd.f32 %v106, %v107
    %109 = vadd.xlane.f32.xlu0 %v108
    %v110 = vpop.xlane.xlu0 %109
    %v111 = vld [vmem:[%s1 + $0x90] sm:$0x1]
    %v112 = vlaneseq
    %v113 = vshrl.u32 %v112, 7
    %v114 = vsub.s32 0, %v113
    %v115 = vrot.slane %v111, %v114
    %v116 = vmul.f32 %v110, %v115
    %v117 = vadd.f32 %v49, %v116
    %s118 = sld [smem:[#allocation2 + $0x9]]
    %v119 = vstv %s118
    %v120 = vmul.f32 %v119, %v27
    %v121 = vmul.f32 %v119, %v28
    %s122 = sld [smem:[#allocation2 + $0xa]]
    %v123 = vstv %s122
    %v124 = vmul.f32 %v123, %v29
    %v125 = vmul.f32 %v123, %v30
    %v126 = vadd.f32 %v120, %v124
    %v127 = vadd.f32 %v121, %v125
    %s128 = sld [smem:[#allocation2 + $0xb]]
    %v129 = vstv %s128
    %v130 = vmul.f32 %v129, %v31
    %v131 = vmul.f32 %v129, %v32
    %v132 = vadd.f32 %v126, %v130
    %v133 = vadd.f32 %v127, %v131
    %s134 = sld [smem:[#allocation2 + $0xc]]
    %v135 = vstv %s134
    %v136 = vmul.f32 %v135, %v33
    %v137 = vmul.f32 %v135, %v34
    %v138 = vadd.f32 %v132, %v136
    %v139 = vadd.f32 %v133, %v137
    %s140 = sld [smem:[#allocation2 + $0xd]]
    %v141 = vstv %s140
    %v142 = vmul.f32 %v141, %v35
    %v143 = vmul.f32 %v141, %v36
    %v144 = vadd.f32 %v138, %v142
    %v145 = vadd.f32 %v139, %v143
    %s146 = sld [smem:[#allocation2 + $0xe]]
    %v147 = vstv %s146
    %v148 = vmul.f32 %v147, %v37
    %v149 = vmul.f32 %v147, %v38
    %v150 = vadd.f32 %v144, %v148
    %v151 = vadd.f32 %v145, %v149
    %s152 = sld [smem:[#allocation2 + $0xf]]
    %v153 = vstv %s152
    %v154 = vmul.f32 %v153, %v39
    %v155 = vmul.f32 %v153, %v40
    %v156 = vadd.f32 %v150, %v154
    %v157 = vadd.f32 %v151, %v155
    %s158 = sld [smem:[#allocation2 + $0x10]]
    %v159 = vstv %s158
    %v160 = vmul.f32 %v159, %v41
    %v161 = vmul.f32 %v159, %v42
    %v162 = vadd.f32 %v156, %v160
    %v163 = vadd.f32 %v157, %v161
    %s164 = sld [smem:[#allocation2 + $0x11]]
    %v165 = vstv %s164
    %v166 = vmul.f32 %v165, %v43
    %v167 = vmul.f32 %v165, %v44
    %v168 = vadd.f32 %v162, %v166
    %v169 = vadd.f32 %v163, %v167
    %s170 = sld [smem:[#allocation2 + $0x49]]
    %v171 = vstv %s170
    %v172 = vadd.f32 %v168, %v171
    %v173 = vadd.f32 %v169, %v171
    %v174 = vmax.f32 %v172, 0.0
    %v175 = vmax.f32 %v173, 0.0
    %v176 = vadd.f32 %v174, %v175
    %177 = vadd.xlane.f32.xlu0 %v176
    %v178 = vpop.xlane.xlu0 %177
    %v179 = vld [vmem:[%s1 + $0x91] sm:$0x1]
    %v180 = vlaneseq
    %v181 = vshrl.u32 %v180, 7
    %v182 = vsub.s32 0, %v181
    %v183 = vrot.slane %v179, %v182
    %v184 = vmul.f32 %v178, %v183
    %v185 = vadd.f32 %v117, %v184
    %s186 = sld [smem:[#allocation2 + $0x12]]
    %v187 = vstv %s186
    %v188 = vmul.f32 %v187, %v27
    %v189 = vmul.f32 %v187, %v28
    %s190 = sld [smem:[#allocation2 + $0x13]]
    %v191 = vstv %s190
    %v192 = vmul.f32 %v191, %v29
    %v193 = vmul.f32 %v191, %v30
    %v194 = vadd.f32 %v188, %v192
    %v195 = vadd.f32 %v189, %v193
    %s196 = sld [smem:[#allocation2 + $0x14]]
    %v197 = vstv %s196
    %v198 = vmul.f32 %v197, %v31
    %v199 = vmul.f32 %v197, %v32
    %v200 = vadd.f32 %v194, %v198
    %v201 = vadd.f32 %v195, %v199
    %s202 = sld [smem:[#allocation2 + $0x15]]
    %v203 = vstv %s202
    %v204 = vmul.f32 %v203, %v33
    %v205 = vmul.f32 %v203, %v34
    %v206 = vadd.f32 %v200, %v204
    %v207 = vadd.f32 %v201, %v205
    %s208 = sld [smem:[#allocation2 + $0x16]]
    %v209 = vstv %s208
    %v210 = vmul.f32 %v209, %v35
    %v211 = vmul.f32 %v209, %v36
    %v212 = vadd.f32 %v206, %v210
    %v213 = vadd.f32 %v207, %v211
    %s214 = sld [smem:[#allocation2 + $0x17]]
    %v215 = vstv %s214
    %v216 = vmul.f32 %v215, %v37
    %v217 = vmul.f32 %v215, %v38
    %v218 = vadd.f32 %v212, %v216
    %v219 = vadd.f32 %v213, %v217
    %s220 = sld [smem:[#allocation2 + $0x18]]
    %v221 = vstv %s220
    %v222 = vmul.f32 %v221, %v39
    %v223 = vmul.f32 %v221, %v40
    %v224 = vadd.f32 %v218, %v222
    %v225 = vadd.f32 %v219, %v223
    %s226 = sld [smem:[#allocation2 + $0x19]]
    %v227 = vstv %s226
    %v228 = vmul.f32 %v227, %v41
    %v229 = vmul.f32 %v227, %v42
    %v230 = vadd.f32 %v224, %v228
    %v231 = vadd.f32 %v225, %v229
    %s232 = sld [smem:[#allocation2 + $0x1a]]
    %v233 = vstv %s232
    %v234 = vmul.f32 %v233, %v43
    %v235 = vmul.f32 %v233, %v44
    %v236 = vadd.f32 %v230, %v234
    %v237 = vadd.f32 %v231, %v235
    %s238 = sld [smem:[#allocation2 + $0x4a]]
    %v239 = vstv %s238
    %v240 = vadd.f32 %v236, %v239
    %v241 = vadd.f32 %v237, %v239
    %v242 = vmax.f32 %v240, 0.0
    %v243 = vmax.f32 %v241, 0.0
    %v244 = vadd.f32 %v242, %v243
    %245 = vadd.xlane.f32.xlu0 %v244
    %v246 = vpop.xlane.xlu0 %245
    %v247 = vld [vmem:[%s1 + $0x92] sm:$0x1]
    %v248 = vlaneseq
    %v249 = vshrl.u32 %v248, 7
    %v250 = vsub.s32 0, %v249
    %v251 = vrot.slane %v247, %v250
    %v252 = vmul.f32 %v246, %v251
    %v253 = vadd.f32 %v185, %v252
    %s254 = sld [smem:[#allocation2 + $0x1b]]
    %v255 = vstv %s254
    %v256 = vmul.f32 %v255, %v27
    %v257 = vmul.f32 %v255, %v28
    %s258 = sld [smem:[#allocation2 + $0x1c]]
    %v259 = vstv %s258
    %v260 = vmul.f32 %v259, %v29
    %v261 = vmul.f32 %v259, %v30
    %v262 = vadd.f32 %v256, %v260
    %v263 = vadd.f32 %v257, %v261
    %s264 = sld [smem:[#allocation2 + $0x1d]]
    %v265 = vstv %s264
    %v266 = vmul.f32 %v265, %v31
    %v267 = vmul.f32 %v265, %v32
    %v268 = vadd.f32 %v262, %v266
    %v269 = vadd.f32 %v263, %v267
    %s270 = sld [smem:[#allocation2 + $0x1e]]
    %v271 = vstv %s270
    %v272 = vmul.f32 %v271, %v33
    %v273 = vmul.f32 %v271, %v34
    %v274 = vadd.f32 %v268, %v272
    %v275 = vadd.f32 %v269, %v273
    %s276 = sld [smem:[#allocation2 + $0x1f]]
    %v277 = vstv %s276
    %v278 = vmul.f32 %v277, %v35
    %v279 = vmul.f32 %v277, %v36
    %v280 = vadd.f32 %v274, %v278
    %v281 = vadd.f32 %v275, %v279
    %s282 = sld [smem:[#allocation2 + $0x20]]
    %v283 = vstv %s282
    %v284 = vmul.f32 %v283, %v37
    %v285 = vmul.f32 %v283, %v38
    %v286 = vadd.f32 %v280, %v284
    %v287 = vadd.f32 %v281, %v285
    %s288 = sld [smem:[#allocation2 + $0x21]]
    %v289 = vstv %s288
    %v290 = vmul.f32 %v289, %v39
    %v291 = vmul.f32 %v289, %v40
    %v292 = vadd.f32 %v286, %v290
    %v293 = vadd.f32 %v287, %v291
    %s294 = sld [smem:[#allocation2 + $0x22]]
    %v295 = vstv %s294
    %v296 = vmul.f32 %v295, %v41
    %v297 = vmul.f32 %v295, %v42
    %v298 = vadd.f32 %v292, %v296
    %v299 = vadd.f32 %v293, %v297
    %s300 = sld [smem:[#allocation2 + $0x23]]
    %v301 = vstv %s300
    %v302 = vmul.f32 %v301, %v43
    %v303 = vmul.f32 %v301, %v44
    %v304 = vadd.f32 %v298, %v302
    %v305 = vadd.f32 %v299, %v303
    %s306 = sld [smem:[#allocation2 + $0x4b]]
    %v307 = vstv %s306
    %v308 = vadd.f32 %v304, %v307
    %v309 = vadd.f32 %v305, %v307
    %v310 = vmax.f32 %v308, 0.0
    %v311 = vmax.f32 %v309, 0.0
    %v312 = vadd.f32 %v310, %v311
    %313 = vadd.xlane.f32.xlu0 %v312
    %v314 = vpop.xlane.xlu0 %313
    %v315 = vld [vmem:[%s1 + $0x93] sm:$0x1]
    %v316 = vlaneseq
    %v317 = vshrl.u32 %v316, 7
    %v318 = vsub.s32 0, %v317
    %v319 = vrot.slane %v315, %v318
    %v320 = vmul.f32 %v314, %v319
    %v321 = vadd.f32 %v253, %v320
    %s322 = sld [smem:[#allocation2 + $0x24]]
    %v323 = vstv %s322
    %v324 = vmul.f32 %v323, %v27
    %v325 = vmul.f32 %v323, %v28
    %s326 = sld [smem:[#allocation2 + $0x25]]
    %v327 = vstv %s326
    %v328 = vmul.f32 %v327, %v29
    %v329 = vmul.f32 %v327, %v30
    %v330 = vadd.f32 %v324, %v328
    %v331 = vadd.f32 %v325, %v329
    %s332 = sld [smem:[#allocation2 + $0x26]]
    %v333 = vstv %s332
    %v334 = vmul.f32 %v333, %v31
    %v335 = vmul.f32 %v333, %v32
    %v336 = vadd.f32 %v330, %v334
    %v337 = vadd.f32 %v331, %v335
    %s338 = sld [smem:[#allocation2 + $0x27]]
    %v339 = vstv %s338
    %v340 = vmul.f32 %v339, %v33
    %v341 = vmul.f32 %v339, %v34
    %v342 = vadd.f32 %v336, %v340
    %v343 = vadd.f32 %v337, %v341
    %s344 = sld [smem:[#allocation2 + $0x28]]
    %v345 = vstv %s344
    %v346 = vmul.f32 %v345, %v35
    %v347 = vmul.f32 %v345, %v36
    %v348 = vadd.f32 %v342, %v346
    %v349 = vadd.f32 %v343, %v347
    %s350 = sld [smem:[#allocation2 + $0x29]]
    %v351 = vstv %s350
    %v352 = vmul.f32 %v351, %v37
    %v353 = vmul.f32 %v351, %v38
    %v354 = vadd.f32 %v348, %v352
    %v355 = vadd.f32 %v349, %v353
    %s356 = sld [smem:[#allocation2 + $0x2a]]
    %v357 = vstv %s356
    %v358 = vmul.f32 %v357, %v39
    %v359 = vmul.f32 %v357, %v40
    %v360 = vadd.f32 %v354, %v358
    %v361 = vadd.f32 %v355, %v359
    %s362 = sld [smem:[#allocation2 + $0x2b]]
    %v363 = vstv %s362
    %v364 = vmul.f32 %v363, %v41
    %v365 = vmul.f32 %v363, %v42
    %v366 = vadd.f32 %v360, %v364
    %v367 = vadd.f32 %v361, %v365
    %s368 = sld [smem:[#allocation2 + $0x2c]]
    %v369 = vstv %s368
    %v370 = vmul.f32 %v369, %v43
    %v371 = vmul.f32 %v369, %v44
    %v372 = vadd.f32 %v366, %v370
    %v373 = vadd.f32 %v367, %v371
    %s374 = sld [smem:[#allocation2 + $0x4c]]
    %v375 = vstv %s374
    %v376 = vadd.f32 %v372, %v375
    %v377 = vadd.f32 %v373, %v375
    %v378 = vmax.f32 %v376, 0.0
    %v379 = vmax.f32 %v377, 0.0
    %v380 = vadd.f32 %v378, %v379
    %381 = vadd.xlane.f32.xlu0 %v380
    %v382 = vpop.xlane.xlu0 %381
    %v383 = vld [vmem:[%s1 + $0x94] sm:$0x1]
    %v384 = vlaneseq
    %v385 = vshrl.u32 %v384, 7
    %v386 = vsub.s32 0, %v385
    %v387 = vrot.slane %v383, %v386
    %v388 = vmul.f32 %v382, %v387
    %v389 = vadd.f32 %v321, %v388
    %s390 = sld [smem:[#allocation2 + $0x2d]]
    %v391 = vstv %s390
    %v392 = vmul.f32 %v391, %v27
    %v393 = vmul.f32 %v391, %v28
    %s394 = sld [smem:[#allocation2 + $0x2e]]
    %v395 = vstv %s394
    %v396 = vmul.f32 %v395, %v29
    %v397 = vmul.f32 %v395, %v30
    %v398 = vadd.f32 %v392, %v396
    %v399 = vadd.f32 %v393, %v397
    %s400 = sld [smem:[#allocation2 + $0x2f]]
    %v401 = vstv %s400
    %v402 = vmul.f32 %v401, %v31
    %v403 = vmul.f32 %v401, %v32
    %v404 = vadd.f32 %v398, %v402
    %v405 = vadd.f32 %v399, %v403
    %s406 = sld [smem:[#allocation2 + $0x30]]
    %v407 = vstv %s406
    %v408 = vmul.f32 %v407, %v33
    %v409 = vmul.f32 %v407, %v34
    %v410 = vadd.f32 %v404, %v408
    %v411 = vadd.f32 %v405, %v409
    %s412 = sld [smem:[#allocation2 + $0x31]]
    %v413 = vstv %s412
    %v414 = vmul.f32 %v413, %v35
    %v415 = vmul.f32 %v413, %v36
    %v416 = vadd.f32 %v410, %v414
    %v417 = vadd.f32 %v411, %v415
    %s418 = sld [smem:[#allocation2 + $0x32]]
    %v419 = vstv %s418
    %v420 = vmul.f32 %v419, %v37
    %v421 = vmul.f32 %v419, %v38
    %v422 = vadd.f32 %v416, %v420
    %v423 = vadd.f32 %v417, %v421
    %s424 = sld [smem:[#allocation2 + $0x33]]
    %v425 = vstv %s424
    %v426 = vmul.f32 %v425, %v39
    %v427 = vmul.f32 %v425, %v40
    %v428 = vadd.f32 %v422, %v426
    %v429 = vadd.f32 %v423, %v427
    %s430 = sld [smem:[#allocation2 + $0x34]]
    %v431 = vstv %s430
    %v432 = vmul.f32 %v431, %v41
    %v433 = vmul.f32 %v431, %v42
    %v434 = vadd.f32 %v428, %v432
    %v435 = vadd.f32 %v429, %v433
    %s436 = sld [smem:[#allocation2 + $0x35]]
    %v437 = vstv %s436
    %v438 = vmul.f32 %v437, %v43
    %v439 = vmul.f32 %v437, %v44
    %v440 = vadd.f32 %v434, %v438
    %v441 = vadd.f32 %v435, %v439
    %s442 = sld [smem:[#allocation2 + $0x4d]]
    %v443 = vstv %s442
    %v444 = vadd.f32 %v440, %v443
    %v445 = vadd.f32 %v441, %v443
    %v446 = vmax.f32 %v444, 0.0
    %v447 = vmax.f32 %v445, 0.0
    %v448 = vadd.f32 %v446, %v447
    %449 = vadd.xlane.f32.xlu0 %v448
    %v450 = vpop.xlane.xlu0 %449
    %v451 = vld [vmem:[%s1 + $0x95] sm:$0x1]
    %v452 = vlaneseq
    %v453 = vshrl.u32 %v452, 7
    %v454 = vsub.s32 0, %v453
    %v455 = vrot.slane %v451, %v454
    %v456 = vmul.f32 %v450, %v455
    %v457 = vadd.f32 %v389, %v456
    %s458 = sld [smem:[#allocation2 + $0x36]]
    %v459 = vstv %s458
    %v460 = vmul.f32 %v459, %v27
    %v461 = vmul.f32 %v459, %v28
    %s462 = sld [smem:[#allocation2 + $0x37]]
    %v463 = vstv %s462
    %v464 = vmul.f32 %v463, %v29
    %v465 = vmul.f32 %v463, %v30
    %v466 = vadd.f32 %v460, %v464
    %v467 = vadd.f32 %v461, %v465
    %s468 = sld [smem:[#allocation2 + $0x38]]
    %v469 = vstv %s468
    %v470 = vmul.f32 %v469, %v31
    %v471 = vmul.f32 %v469, %v32
    %v472 = vadd.f32 %v466, %v470
    %v473 = vadd.f32 %v467, %v471
    %s474 = sld [smem:[#allocation2 + $0x39]]
    %v475 = vstv %s474
    %v476 = vmul.f32 %v475, %v33
    %v477 = vmul.f32 %v475, %v34
    %v478 = vadd.f32 %v472, %v476
    %v479 = vadd.f32 %v473, %v477
    %s480 = sld [smem:[#allocation2 + $0x3a]]
    %v481 = vstv %s480
    %v482 = vmul.f32 %v481, %v35
    %v483 = vmul.f32 %v481, %v36
    %v484 = vadd.f32 %v478, %v482
    %v485 = vadd.f32 %v479, %v483
    %s486 = sld [smem:[#allocation2 + $0x3b]]
    %v487 = vstv %s486
    %v488 = vmul.f32 %v487, %v37
    %v489 = vmul.f32 %v487, %v38
    %v490 = vadd.f32 %v484, %v488
    %v491 = vadd.f32 %v485, %v489
    %s492 = sld [smem:[#allocation2 + $0x3c]]
    %v493 = vstv %s492
    %v494 = vmul.f32 %v493, %v39
    %v495 = vmul.f32 %v493, %v40
    %v496 = vadd.f32 %v490, %v494
    %v497 = vadd.f32 %v491, %v495
    %s498 = sld [smem:[#allocation2 + $0x3d]]
    %v499 = vstv %s498
    %v500 = vmul.f32 %v499, %v41
    %v501 = vmul.f32 %v499, %v42
    %v502 = vadd.f32 %v496, %v500
    %v503 = vadd.f32 %v497, %v501
    %s504 = sld [smem:[#allocation2 + $0x3e]]
    %v505 = vstv %s504
    %v506 = vmul.f32 %v505, %v43
    %v507 = vmul.f32 %v505, %v44
    %v508 = vadd.f32 %v502, %v506
    %v509 = vadd.f32 %v503, %v507
    %s510 = sld [smem:[#allocation2 + $0x4e]]
    %v511 = vstv %s510
    %v512 = vadd.f32 %v508, %v511
    %v513 = vadd.f32 %v509, %v511
    %v514 = vmax.f32 %v512, 0.0
    %v515 = vmax.f32 %v513, 0.0
    %v516 = vadd.f32 %v514, %v515
    %517 = vadd.xlane.f32.xlu0 %v516
    %v518 = vpop.xlane.xlu0 %517
    %v519 = vld [vmem:[%s1 + $0x96] sm:$0x1]
    %v520 = vlaneseq
    %v521 = vshrl.u32 %v520, 7
    %v522 = vsub.s32 0, %v521
    %v523 = vrot.slane %v519, %v522
    %v524 = vmul.f32 %v518, %v523
    %v525 = vadd.f32 %v457, %v524
    %s526 = sld [smem:[#allocation2 + $0x3f]]
    %v527 = vstv %s526
    %v528 = vmul.f32 %v527, %v27
    %v529 = vmul.f32 %v527, %v28
    %s530 = sld [smem:[#allocation2 + $0x40]]
    %v531 = vstv %s530
    %v532 = vmul.f32 %v531, %v29
    %v533 = vmul.f32 %v531, %v30
    %v534 = vadd.f32 %v528, %v532
    %v535 = vadd.f32 %v529, %v533
    %s536 = sld [smem:[#allocation2 + $0x41]]
    %v537 = vstv %s536
    %v538 = vmul.f32 %v537, %v31
    %v539 = vmul.f32 %v537, %v32
    %v540 = vadd.f32 %v534, %v538
    %v541 = vadd.f32 %v535, %v539
    %s542 = sld [smem:[#allocation2 + $0x42]]
    %v543 = vstv %s542
    %v544 = vmul.f32 %v543, %v33
    %v545 = vmul.f32 %v543, %v34
    %v546 = vadd.f32 %v540, %v544
    %v547 = vadd.f32 %v541, %v545
    %s548 = sld [smem:[#allocation2 + $0x43]]
    %v549 = vstv %s548
    %v550 = vmul.f32 %v549, %v35
    %v551 = vmul.f32 %v549, %v36
    %v552 = vadd.f32 %v546, %v550
    %v553 = vadd.f32 %v547, %v551
    %s554 = sld [smem:[#allocation2 + $0x44]]
    %v555 = vstv %s554
    %v556 = vmul.f32 %v555, %v37
    %v557 = vmul.f32 %v555, %v38
    %v558 = vadd.f32 %v552, %v556
    %v559 = vadd.f32 %v553, %v557
    %s560 = sld [smem:[#allocation2 + $0x45]]
    %v561 = vstv %s560
    %v562 = vmul.f32 %v561, %v39
    %v563 = vmul.f32 %v561, %v40
    %v564 = vadd.f32 %v558, %v562
    %v565 = vadd.f32 %v559, %v563
    %s566 = sld [smem:[#allocation2 + $0x46]]
    %v567 = vstv %s566
    %v568 = vmul.f32 %v567, %v41
    %v569 = vmul.f32 %v567, %v42
    %v570 = vadd.f32 %v564, %v568
    %v571 = vadd.f32 %v565, %v569
    %s572 = sld [smem:[#allocation2 + $0x47]]
    %v573 = vstv %s572
    %v574 = vmul.f32 %v573, %v43
    %v575 = vmul.f32 %v573, %v44
    %v576 = vadd.f32 %v570, %v574
    %v577 = vadd.f32 %v571, %v575
    %s578 = sld [smem:[#allocation2 + $0x4f]]
    %v579 = vstv %s578
    %v580 = vadd.f32 %v576, %v579
    %v581 = vadd.f32 %v577, %v579
    %v582 = vmax.f32 %v580, 0.0
    %v583 = vmax.f32 %v581, 0.0
    %v584 = vadd.f32 %v582, %v583
    %585 = vadd.xlane.f32.xlu0 %v584
    %v586 = vpop.xlane.xlu0 %585
    %v587 = vld [vmem:[%s1 + $0x97] sm:$0x1]
    %v588 = vlaneseq
    %v589 = vshrl.u32 %v588, 7
    %v590 = vsub.s32 0, %v589
    %v591 = vrot.slane %v587, %v590
    %v592 = vmul.f32 %v586, %v591
    %v593 = vadd.f32 %v525, %v592
    %v594 = vmax.f32 %v593, 0.0
    %v595 = vld [vmem:[%s1] sm:$0xff]
    %v596 = vld [vmem:[%s1 + $0x8] sm:$0xff]
    %v597 = vld [vmem:[%s1 + $0x98] sm:$0x1]
    %v598 = vlaneseq
    %v599 = vshrl.u32 %v598, 7
    %v600 = vsub.s32 0, %v599
    %v601 = vrot.slane %v597, %v600
    %vm602 = vcmask 130048
    %v604 = vsel %vm602, %v594, 0
    %606 = vmatprep.subr.mxu0 0.0
    %607 = vmatpush1.msra.mxu0 %v595
    %608 = vmatprep.subr.mxu0 0.0
    %609 = vmatpush1.msra.mxu0 %v596
    %610 = vmatprep.subr.mxu0 0.0
    %611 = vmatpush1.msra.mxu0 0.0
    %612 = vmatprep.subr.mxu0 0.0
    %613 = vmatpush1.msra.mxu0 0.0
    %614 = vmatprep.subr.mxu0 0.0
    %615 = vmatpush1.msra.mxu0 0.0
    %616 = vmatprep.subr.mxu0 0.0
    %617 = vmatpush1.msra.mxu0 0.0
    %618 = vmatprep.subr.mxu0 0.0
    %619 = vmatpush1.msra.mxu0 0.0
    %620 = vmatprep.subr.mxu0 0.0
    %621 = vmatpush1.msra.mxu0 0.0
    %622 = vmatprep.subr.mxu0 0.0
    %623 = vmatpush1.msra.mxu0 0.0
    %624 = vmatprep.subr.mxu0 0.0
    %625 = vmatpush1.msra.mxu0 0.0
    %626 = vmatprep.subr.mxu0 0.0
    %627 = vmatpush1.msra.mxu0 0.0
    %628 = vmatprep.subr.mxu0 0.0
    %629 = vmatpush1.msra.mxu0 0.0
    %630 = vmatprep.subr.mxu0 0.0
    %631 = vmatpush1.msra.mxu0 0.0
    %632 = vmatprep.subr.mxu0 0.0
    %633 = vmatpush1.msra.mxu0 0.0
    %634 = vmatprep.subr.mxu0 0.0
    %635 = vmatpush1.msra.mxu0 0.0
    %636 = vmatprep.subr.mxu0 0.0
    %637 = vmatpush1.msra.mxu0 0.0
    %638 = vmatprep.subr.mxu0 0.0
    %639 = vmatpush1.msra.mxu0 0.0
    %640 = vmatprep.subr.mxu0 0.0
    %641 = vmatpush1.msra.mxu0 0.0
    %642 = vmatprep.subr.mxu0 0.0
    %643 = vmatpush1.msra.mxu0 0.0
    %644 = vmatprep.subr.mxu0 0.0
    %645 = vmatpush1.msra.mxu0 0.0
    %646 = vmatprep.subr.mxu0 0.0
    %647 = vmatpush1.msra.mxu0 0.0
    %648 = vmatprep.subr.mxu0 0.0
    %649 = vmatpush1.msra.mxu0 0.0
    %650 = vmatprep.subr.mxu0 0.0
    %651 = vmatpush1.msra.mxu0 0.0
    %652 = vmatprep.subr.mxu0 0.0
    %653 = vmatpush1.msra.mxu0 0.0
    %654 = vmatprep.subr.mxu0 0.0
    %655 = vmatpush1.msra.mxu0 0.0
    %656 = vmatprep.subr.mxu0 0.0
    %657 = vmatpush1.msra.mxu0 0.0
    %658 = vmatprep.subr.mxu0 0.0
    %659 = vmatpush1.msra.mxu0 0.0
    %660 = vmatprep.subr.mxu0 0.0
    %661 = vmatpush1.msra.mxu0 0.0
    %662 = vmatprep.subr.mxu0 0.0
    %663 = vmatpush1.msra.mxu0 0.0
    %664 = vmatprep.subr.mxu0 0.0
    %665 = vmatpush1.msra.mxu0 0.0
    %666 = vmatprep.subr.mxu0 0.0
    %667 = vmatpush1.msra.mxu0 0.0
    %668 = vmatprep.subr.mxu0 0.0
    %669 = vmatpush1.msra.mxu0 0.0
    %670 = vmatprep.mubr.f32.mxu0 0.0
    %671 = vmatmul.mubr.f32.gmra.mrb[0].mxu0 %v604
    %v672 = vpop.f32.mrb[0].mxu0
    %v673 = vadd.f32 %v601, %v672
    %v674 = vpop.f32.mrb[0].mxu0
    %675 = vdwg.mxu0
    %v677 = vrot.slane %v673, 3
    %v679 = vrot.slane %v673, 7
    %v681 = vrot.slane %v673, 2
    %v683 = vrot.slane %v673, 6
    %v685 = vrot.slane %v673, 1
    %v687 = vrot.slane %v673, 5
    %vm689 = vcmask 1040384
    %v690 = vsel %vm689, %v673, %v677
    %vm691 = vcmask 1041408
    %v692 = vsel %vm691, %v690, %v679
    %vm693 = vcmask 1042432
    %v694 = vsel %vm693, %v692, %v681
    %vm695 = vcmask 1043456
    %v696 = vsel %vm695, %v694, %v683
    %vm697 = vcmask 1044480
    %v698 = vsel %vm697, %v696, %v685
    %vm699 = vcmask 1045504
    %v700 = vsel %vm699, %v698, %v687
    %vm701 = vcmask 1046528
    %v702 = vsel %vm701, %v700, %v673
    %v703 = vld [vmem:[%s1 + $0x10] sm:$0xff]
    %v704 = vld [vmem:[%s1 + $0x18] sm:$0xff]
    %v705 = vld [vmem:[%s1 + $0x20] sm:$0xff]
    %v706 = vld [vmem:[%s1 + $0x28] sm:$0xff]
    %v707 = vlaneseq
    %v708 = vand.u32 %v707, 127
    %vm709 = vcmp.ge.s32.totalorder %v708, 64
    %vm710 = vcmp.lt.s32.totalorder %v708, 96
    %vm711 = vmand %vm709, %vm710
    %vm712 = vcmask 261120
    %v714 = vsel %vm712, 0.0, 0
    %716 = vmatprep.subr.mxu0 0.0
    %717 = vmatpush1.msra.mxu0 %v703
    %718 = vmatprep.subr.mxu0 0.0
    %719 = vmatpush1.msra.mxu0 %v704
    %720 = vmatprep.subr.mxu0 0.0
    %721 = vmatpush1.msra.mxu0 %v705
    %722 = vmatprep.subr.mxu0 0.0
    %723 = vmatpush1.msra.mxu0 %v706
    %724 = vmatprep.subr.mxu0 0.0
    %725 = vmatpush1.msra.mxu0 0.0
    %726 = vmatprep.subr.mxu0 0.0
    %727 = vmatpush1.msra.mxu0 0.0
    %728 = vmatprep.subr.mxu0 0.0
    %729 = vmatpush1.msra.mxu0 0.0
    %730 = vmatprep.subr.mxu0 0.0
    %731 = vmatpush1.msra.mxu0 0.0
    %732 = vmatprep.subr.mxu0 0.0
    %733 = vmatpush1.msra.mxu0 0.0
    %734 = vmatprep.subr.mxu0 0.0
    %735 = vmatpush1.msra.mxu0 0.0
    %736 = vmatprep.subr.mxu0 0.0
    %737 = vmatpush1.msra.mxu0 0.0
    %738 = vmatprep.subr.mxu0 0.0
    %739 = vmatpush1.msra.mxu0 0.0
    %740 = vmatprep.subr.mxu0 0.0
    %741 = vmatpush1.msra.mxu0 0.0
    %742 = vmatprep.subr.mxu0 0.0
    %743 = vmatpush1.msra.mxu0 0.0
    %744 = vmatprep.subr.mxu0 0.0
    %745 = vmatpush1.msra.mxu0 0.0
    %746 = vmatprep.subr.mxu0 0.0
    %747 = vmatpush1.msra.mxu0 0.0
    %748 = vmatprep.subr.mxu0 0.0
    %749 = vmatpush1.msra.mxu0 0.0
    %750 = vmatprep.subr.mxu0 0.0
    %751 = vmatpush1.msra.mxu0 0.0
    %752 = vmatprep.subr.mxu0 0.0
    %753 = vmatpush1.msra.mxu0 0.0
    %754 = vmatprep.subr.mxu0 0.0
    %755 = vmatpush1.msra.mxu0 0.0
    %756 = vmatprep.subr.mxu0 0.0
    %757 = vmatpush1.msra.mxu0 0.0
    %758 = vmatprep.subr.mxu0 0.0
    %759 = vmatpush1.msra.mxu0 0.0
    %760 = vmatprep.subr.mxu0 0.0
    %761 = vmatpush1.msra.mxu0 0.0
    %762 = vmatprep.subr.mxu0 0.0
    %763 = vmatpush1.msra.mxu0 0.0
    %764 = vmatprep.subr.mxu0 0.0
    %765 = vmatpush1.msra.mxu0 0.0
    %766 = vmatprep.subr.mxu0 0.0
    %767 = vmatpush1.msra.mxu0 0.0
    %768 = vmatprep.subr.mxu0 0.0
    %769 = vmatpush1.msra.mxu0 0.0
    %770 = vmatprep.subr.mxu0 0.0
    %771 = vmatpush1.msra.mxu0 0.0
    %772 = vmatprep.subr.mxu0 0.0
    %773 = vmatpush1.msra.mxu0 0.0
    %774 = vmatprep.subr.mxu0 0.0
    %775 = vmatpush1.msra.mxu0 0.0
    %776 = vmatprep.subr.mxu0 0.0
    %777 = vmatpush1.msra.mxu0 0.0
    %778 = vmatprep.subr.mxu0 0.0
    %779 = vmatpush1.msra.mxu0 0.0
    %780 = vmatprep.mubr.f32.mxu0 0.0
    %781 = vmatmul.mubr.f32.gmra.mrb[0].mxu0 %v714
    %v782 = vpop.f32.mrb[0].mxu0
    %v783 = vadd.f32 0.0, %v782
    %v784 = vpop.f32.mrb[0].mxu0
    %785 = vdwg.mxu0
    %v786 = vadd.f32 %v702, %v783
    %v787 = vtanh.pop %v786
    %v788 = vxor.u32 %v786, 2147483648
    %v789 = vmul.f32 %v788, 1.442695
    %v790 = vpow.pop %v789
    %v791 = vadd.f32 %v790, 1.0
    %v792 = vrcp.pop %v791
    %v793 = vmul.f32 1.0, %v792
    %v794 = vsel %vm711, %v787, %v793
    %v795 = vmul.f32 %v794, 0.0
    %797 = vrot.lane.b32.xlu0 %v794, 64
    %v798 = vpop.permute.xlu0 %797
    %v800 = vmul.f32 %v794, %v798
    %802 = vrot.lane.b32.xlu0 %v800, 32
    %v803 = vpop.permute.xlu0 %802
    %v805 = vadd.f32 %v795, %v803
    %v806 = vtanh.pop %v805
    %808 = vrot.lane.b32.xlu0 %v806, 64
    %v809 = vpop.permute.xlu0 %808
    %v811 = vmul.f32 %v794, %v809
    %813 = vrot.lane.b32.xlu0 %v811, 32
    %v814 = vpop.permute.xlu0 %813
    %v815 = vsel %vm712, %v814, 0
    %817 = vmatprep.subr.mxu0 0.0
    %818 = vmatpush1.msra.mxu0 %v703
    %819 = vmatprep.subr.mxu0 0.0
    %820 = vmatpush1.msra.mxu0 %v704
    %821 = vmatprep.subr.mxu0 0.0
    %822 = vmatpush1.msra.mxu0 %v705
    %823 = vmatprep.subr.mxu0 0.0
    %824 = vmatpush1.msra.mxu0 %v706
    %825 = vmatprep.subr.mxu0 0.0
    %826 = vmatpush1.msra.mxu0 0.0
    %827 = vmatprep.subr.mxu0 0.0
    %828 = vmatpush1.msra.mxu0 0.0
    %829 = vmatprep.subr.mxu0 0.0
    %830 = vmatpush1.msra.mxu0 0.0
    %831 = vmatprep.subr.mxu0 0.0
    %832 = vmatpush1.msra.mxu0 0.0
    %833 = vmatprep.subr.mxu0 0.0
    %834 = vmatpush1.msra.mxu0 0.0
    %835 = vmatprep.subr.mxu0 0.0
    %836 = vmatpush1.msra.mxu0 0.0
    %837 = vmatprep.subr.mxu0 0.0
    %838 = vmatpush1.msra.mxu0 0.0
    %839 = vmatprep.subr.mxu0 0.0
    %840 = vmatpush1.msra.mxu0 0.0
    %841 = vmatprep.subr.mxu0 0.0
    %842 = vmatpush1.msra.mxu0 0.0
    %843 = vmatprep.subr.mxu0 0.0
    %844 = vmatpush1.msra.mxu0 0.0
    %845 = vmatprep.subr.mxu0 0.0
    %846 = vmatpush1.msra.mxu0 0.0
    %847 = vmatprep.subr.mxu0 0.0
    %848 = vmatpush1.msra.mxu0 0.0
    %849 = vmatprep.subr.mxu0 0.0
    %850 = vmatpush1.msra.mxu0 0.0
    %851 = vmatprep.subr.mxu0 0.0
    %852 = vmatpush1.msra.mxu0 0.0
    %853 = vmatprep.subr.mxu0 0.0
    %854 = vmatpush1.msra.mxu0 0.0
    %855 = vmatprep.subr.mxu0 0.0
    %856 = vmatpush1.msra.mxu0 0.0
    %857 = vmatprep.subr.mxu0 0.0
    %858 = vmatpush1.msra.mxu0 0.0
    %859 = vmatprep.subr.mxu0 0.0
    %860 = vmatpush1.msra.mxu0 0.0
    %861 = vmatprep.subr.mxu0 0.0
    %862 = vmatpush1.msra.mxu0 0.0
    %863 = vmatprep.subr.mxu0 0.0
    %864 = vmatpush1.msra.mxu0 0.0
    %865 = vmatprep.subr.mxu0 0.0
    %866 = vmatpush1.msra.mxu0 0.0
    %867 = vmatprep.subr.mxu0 0.0
    %868 = vmatpush1.msra.mxu0 0.0
    %869 = vmatprep.subr.mxu0 0.0
    %870 = vmatpush1.msra.mxu0 0.0
    %871 = vmatprep.subr.mxu0 0.0
    %872 = vmatpush1.msra.mxu0 0.0
    %873 = vmatprep.subr.mxu0 0.0
    %874 = vmatpush1.msra.mxu0 0.0
    %875 = vmatprep.subr.mxu0 0.0
    %876 = vmatpush1.msra.mxu0 0.0
    %877 = vmatprep.subr.mxu0 0.0
    %878 = vmatpush1.msra.mxu0 0.0
    %879 = vmatprep.subr.mxu0 0.0
    %880 = vmatpush1.msra.mxu0 0.0
    %881 = vmatprep.mubr.f32.mxu0 0.0
    %882 = vmatmul.mubr.f32.gmra.mrb[0].mxu0 %v815
    %v883 = vpop.f32.mrb[0].mxu0
    %v884 = vadd.f32 0.0, %v883
    %v885 = vpop.f32.mrb[0].mxu0
    %886 = vdwg.mxu0
    %v888 = vrot.slane %v884, 6
    %v890 = vadd.f32 %v702, %v888
    %v891 = vtanh.pop %v890
    %v892 = vxor.u32 %v890, 2147483648
    %v893 = vmul.f32 %v892, 1.442695
    %v894 = vpow.pop %v893
    %v895 = vadd.f32 %v894, 1.0
    %v896 = vrcp.pop %v895
    %v897 = vmul.f32 1.0, %v896
    %v898 = vsel %vm711, %v891, %v897
    %v900 = vrot.slane %v805, 6
    %v902 = vmul.f32 %v898, %v900
    %904 = vrot.lane.b32.xlu0 %v898, 64
    %v905 = vpop.permute.xlu0 %904
    %v907 = vmul.f32 %v898, %v905
    %909 = vrot.lane.b32.xlu0 %v907, 32
    %v910 = vpop.permute.xlu0 %909
    %v912 = vadd.f32 %v902, %v910
    %v913 = vtanh.pop %v912
    %915 = vrot.lane.b32.xlu0 %v913, 64
    %v916 = vpop.permute.xlu0 %915
    %v918 = vmul.f32 %v898, %v916
    %v920 = vrot.slane %v918, 2
    %921 = vrot.lane.b32.xlu0 %v920, 32
    %v922 = vpop.permute.xlu0 %921
    %v923 = vsel %vm712, %v922, 0
    %925 = vmatprep.subr.mxu0 0.0
    %926 = vmatpush1.msra.mxu0 %v703
    %927 = vmatprep.subr.mxu0 0.0
    %928 = vmatpush1.msra.mxu0 %v704
    %929 = vmatprep.subr.mxu0 0.0
    %930 = vmatpush1.msra.mxu0 %v705
    %931 = vmatprep.subr.mxu0 0.0
    %932 = vmatpush1.msra.mxu0 %v706
    %933 = vmatprep.subr.mxu0 0.0
    %934 = vmatpush1.msra.mxu0 0.0
    %935 = vmatprep.subr.mxu0 0.0
    %936 = vmatpush1.msra.mxu0 0.0
    %937 = vmatprep.subr.mxu0 0.0
    %938 = vmatpush1.msra.mxu0 0.0
    %939 = vmatprep.subr.mxu0 0.0
    %940 = vmatpush1.msra.mxu0 0.0
    %941 = vmatprep.subr.mxu0 0.0
    %942 = vmatpush1.msra.mxu0 0.0
    %943 = vmatprep.subr.mxu0 0.0
    %944 = vmatpush1.msra.mxu0 0.0
    %945 = vmatprep.subr.mxu0 0.0
    %946 = vmatpush1.msra.mxu0 0.0
    %947 = vmatprep.subr.mxu0 0.0
    %948 = vmatpush1.msra.mxu0 0.0
    %949 = vmatprep.subr.mxu0 0.0
    %950 = vmatpush1.msra.mxu0 0.0
    %951 = vmatprep.subr.mxu0 0.0
    %952 = vmatpush1.msra.mxu0 0.0
    %953 = vmatprep.subr.mxu0 0.0
    %954 = vmatpush1.msra.mxu0 0.0
    %955 = vmatprep.subr.mxu0 0.0
    %956 = vmatpush1.msra.mxu0 0.0
    %957 = vmatprep.subr.mxu0 0.0
    %958 = vmatpush1.msra.mxu0 0.0
    %959 = vmatprep.subr.mxu0 0.0
    %960 = vmatpush1.msra.mxu0 0.0
    %961 = vmatprep.subr.mxu0 0.0
    %962 = vmatpush1.msra.mxu0 0.0
    %963 = vmatprep.subr.mxu0 0.0
    %964 = vmatpush1.msra.mxu0 0.0
    %965 = vmatprep.subr.mxu0 0.0
    %966 = vmatpush1.msra.mxu0 0.0
    %967 = vmatprep.subr.mxu0 0.0
    %968 = vmatpush1.msra.mxu0 0.0
    %969 = vmatprep.subr.mxu0 0.0
    %970 = vmatpush1.msra.mxu0 0.0
    %971 = vmatprep.subr.mxu0 0.0
    %972 = vmatpush1.msra.mxu0 0.0
    %973 = vmatprep.subr.mxu0 0.0
    %974 = vmatpush1.msra.mxu0 0.0
    %975 = vmatprep.subr.mxu0 0.0
    %976 = vmatpush1.msra.mxu0 0.0
    %977 = vmatprep.subr.mxu0 0.0
    %978 = vmatpush1.msra.mxu0 0.0
    %979 = vmatprep.subr.mxu0 0.0
    %980 = vmatpush1.msra.mxu0 0.0
    %981 = vmatprep.subr.mxu0 0.0
    %982 = vmatpush1.msra.mxu0 0.0
    %983 = vmatprep.subr.mxu0 0.0
    %984 = vmatpush1.msra.mxu0 0.0
    %985 = vmatprep.subr.mxu0 0.0
    %986 = vmatpush1.msra.mxu0 0.0
    %987 = vmatprep.subr.mxu0 0.0
    %988 = vmatpush1.msra.mxu0 0.0
    %989 = vmatprep.mubr.f32.mxu0 0.0
    %990 = vmatmul.mubr.f32.gmra.mrb[0].mxu0 %v923
    %v991 = vpop.f32.mrb[0].mxu0
    %v992 = vadd.f32 0.0, %v991
    %v993 = vpop.f32.mrb[0].mxu0
    %994 = vdwg.mxu0
    %v996 = vrot.slane %v992, 4
    %v998 = vadd.f32 %v702, %v996
    %v999 = vtanh.pop %v998
    %v1000 = vxor.u32 %v998, 2147483648
    %v1001 = vmul.f32 %v1000, 1.442695
    %v1002 = vpow.pop %v1001
    %v1003 = vadd.f32 %v1002, 1.0
    %v1004 = vrcp.pop %v1003
    %v1005 = vmul.f32 1.0, %v1004
    %v1006 = vsel %vm711, %v999, %v1005
    %v1008 = vrot.slane %v912, 6
    %v1010 = vmul.f32 %v1006, %v1008
    %1012 = vrot.lane.b32.xlu0 %v1006, 64
    %v1013 = vpop.permute.xlu0 %1012
    %v1015 = vmul.f32 %v1006, %v1013
    %1017 = vrot.lane.b32.xlu0 %v1015, 32
    %v1018 = vpop.permute.xlu0 %1017
    %v1020 = vadd.f32 %v1010, %v1018
    %v1021 = vtanh.pop %v1020
    %1023 = vrot.lane.b32.xlu0 %v1021, 64
    %v1024 = vpop.permute.xlu0 %1023
    %v1026 = vmul.f32 %v1006, %v1024
    %v1028 = vrot.slane %v1026, 4
    %1029 = vrot.lane.b32.xlu0 %v1028, 32
    %v1030 = vpop.permute.xlu0 %1029
    %v1031 = vsel %vm712, %v1030, 0
    %1033 = vmatprep.subr.mxu0 0.0
    %1034 = vmatpush1.msra.mxu0 %v703
    %1035 = vmatprep.subr.mxu0 0.0
    %1036 = vmatpush1.msra.mxu0 %v704
    %1037 = vmatprep.subr.mxu0 0.0
    %1038 = vmatpush1.msra.mxu0 %v705
    %1039 = vmatprep.subr.mxu0 0.0
    %1040 = vmatpush1.msra.mxu0 %v706
    %1041 = vmatprep.subr.mxu0 0.0
    %1042 = vmatpush1.msra.mxu0 0.0
    %1043 = vmatprep.subr.mxu0 0.0
    %1044 = vmatpush1.msra.mxu0 0.0
    %1045 = vmatprep.subr.mxu0 0.0
    %1046 = vmatpush1.msra.mxu0 0.0
    %1047 = vmatprep.subr.mxu0 0.0
    %1048 = vmatpush1.msra.mxu0 0.0
    %1049 = vmatprep.subr.mxu0 0.0
    %1050 = vmatpush1.msra.mxu0 0.0
    %1051 = vmatprep.subr.mxu0 0.0
    %1052 = vmatpush1.msra.mxu0 0.0
    %1053 = vmatprep.subr.mxu0 0.0
    %1054 = vmatpush1.msra.mxu0 0.0
    %1055 = vmatprep.subr.mxu0 0.0
    %1056 = vmatpush1.msra.mxu0 0.0
    %1057 = vmatprep.subr.mxu0 0.0
    %1058 = vmatpush1.msra.mxu0 0.0
    %1059 = vmatprep.subr.mxu0 0.0
    %1060 = vmatpush1.msra.mxu0 0.0
    %1061 = vmatprep.subr.mxu0 0.0
    %1062 = vmatpush1.msra.mxu0 0.0
    %1063 = vmatprep.subr.mxu0 0.0
    %1064 = vmatpush1.msra.mxu0 0.0
    %1065 = vmatprep.subr.mxu0 0.0
    %1066 = vmatpush1.msra.mxu0 0.0
    %1067 = vmatprep.subr.mxu0 0.0
    %1068 = vmatpush1.msra.mxu0 0.0
    %1069 = vmatprep.subr.mxu0 0.0
    %1070 = vmatpush1.msra.mxu0 0.0
    %1071 = vmatprep.subr.mxu0 0.0
    %1072 = vmatpush1.msra.mxu0 0.0
    %1073 = vmatprep.subr.mxu0 0.0
    %1074 = vmatpush1.msra.mxu0 0.0
    %1075 = vmatprep.subr.mxu0 0.0
    %1076 = vmatpush1.msra.mxu0 0.0
    %1077 = vmatprep.subr.mxu0 0.0
    %1078 = vmatpush1.msra.mxu0 0.0
    %1079 = vmatprep.subr.mxu0 0.0
    %1080 = vmatpush1.msra.mxu0 0.0
    %1081 = vmatprep.subr.mxu0 0.0
    %1082 = vmatpush1.msra.mxu0 0.0
    %1083 = vmatprep.subr.mxu0 0.0
    %1084 = vmatpush1.msra.mxu0 0.0
    %1085 = vmatprep.subr.mxu0 0.0
    %1086 = vmatpush1.msra.mxu0 0.0
    %1087 = vmatprep.subr.mxu0 0.0
    %1088 = vmatpush1.msra.mxu0 0.0
    %1089 = vmatprep.subr.mxu0 0.0
    %1090 = vmatpush1.msra.mxu0 0.0
    %1091 = vmatprep.subr.mxu0 0.0
    %1092 = vmatpush1.msra.mxu0 0.0
    %1093 = vmatprep.subr.mxu0 0.0
    %1094 = vmatpush1.msra.mxu0 0.0
    %1095 = vmatprep.subr.mxu0 0.0
    %1096 = vmatpush1.msra.mxu0 0.0
    %1097 = vmatprep.mubr.f32.mxu0 0.0
    %1098 = vmatmul.mubr.f32.gmra.mrb[0].mxu0 %v1031
    %v1099 = vpop.f32.mrb[0].mxu0
    %v1100 = vadd.f32 0.0, %v1099
    %v1101 = vpop.f32.mrb[0].mxu0
    %1102 = vdwg.mxu0
    %v1104 = vrot.slane %v1100, 2
    %v1106 = vadd.f32 %v702, %v1104
    %v1107 = vtanh.pop %v1106
    %v1108 = vxor.u32 %v1106, 2147483648
    %v1109 = vmul.f32 %v1108, 1.442695
    %v1110 = vpow.pop %v1109
    %v1111 = vadd.f32 %v1110, 1.0
    %v1112 = vrcp.pop %v1111
    %v1113 = vmul.f32 1.0, %v1112
    %v1114 = vsel %vm711, %v1107, %v1113
    %v1116 = vrot.slane %v1020, 6
    %v1118 = vmul.f32 %v1114, %v1116
    %1120 = vrot.lane.b32.xlu0 %v1114, 64
    %v1121 = vpop.permute.xlu0 %1120
    %v1123 = vmul.f32 %v1114, %v1121
    %1125 = vrot.lane.b32.xlu0 %v1123, 32
    %v1126 = vpop.permute.xlu0 %1125
    %v1128 = vadd.f32 %v1118, %v1126
    %v1129 = vtanh.pop %v1128
    %1131 = vrot.lane.b32.xlu0 %v1129, 64
    %v1132 = vpop.permute.xlu0 %1131
    %v1134 = vmul.f32 %v1114, %v1132
    %v1135 = vrot.slane %v918, 1
    %v1137 = vrot.slane %v1026, 2
    %v1140 = vrot.slane %v1134, 3
    %v1142 = vrot.slane %v811, 5
    %v1144 = vrot.slane %v918, 6
    %v1146 = vrot.slane %v1026, 7
    %v1148 = vsel %vm689, %v811, %v1135
    %v1149 = vsel %vm691, %v1148, %v1137
    %v1150 = vsel %vm693, %v1149, %v1140
    %v1151 = vsel %vm695, %v1150, %v1142
    %v1152 = vsel %vm697, %v1151, %v1144
    %v1153 = vsel %vm699, %v1152, %v1146
    %v1154 = vsel %vm701, %v1153, %v1134
    %v1155 = vld [vmem:[%s1 + $0x30] sm:$0xff]
    %v1156 = vld [vmem:[%s1 + $0x38] sm:$0xff]
    %v1157 = vld [vmem:[%s1 + $0x40] sm:$0xff]
    %v1158 = vld [vmem:[%s1 + $0x48] sm:$0xff]
    %v1159 = vld [vmem:[%s1 + $0x9a] sm:$0x1]
    %v1160 = vlaneseq
    %v1161 = vshrl.u32 %v1160, 7
    %v1162 = vsub.s32 0, %v1161
    %v1163 = vrot.slane %v1159, %v1162
    %1165 = vrot.lane.b32.xlu0 %v1154, 32
    %v1166 = vpop.permute.xlu0 %1165
    %v1167 = vsel %vm712, %v1166, 0
    %1169 = vmatprep.subr.mxu0 0.0
    %1170 = vmatpush1.msra.mxu0 %v1155
    %1171 = vmatprep.subr.mxu0 0.0
    %1172 = vmatpush1.msra.mxu0 %v1156
    %1173 = vmatprep.subr.mxu0 0.0
    %1174 = vmatpush1.msra.mxu0 %v1157
    %1175 = vmatprep.subr.mxu0 0.0
    %1176 = vmatpush1.msra.mxu0 %v1158
    %1177 = vmatprep.subr.mxu0 0.0
    %1178 = vmatpush1.msra.mxu0 0.0
    %1179 = vmatprep.subr.mxu0 0.0
    %1180 = vmatpush1.msra.mxu0 0.0
    %1181 = vmatprep.subr.mxu0 0.0
    %1182 = vmatpush1.msra.mxu0 0.0
    %1183 = vmatprep.subr.mxu0 0.0
    %1184 = vmatpush1.msra.mxu0 0.0
    %1185 = vmatprep.subr.mxu0 0.0
    %1186 = vmatpush1.msra.mxu0 0.0
    %1187 = vmatprep.subr.mxu0 0.0
    %1188 = vmatpush1.msra.mxu0 0.0
    %1189 = vmatprep.subr.mxu0 0.0
    %1190 = vmatpush1.msra.mxu0 0.0
    %1191 = vmatprep.subr.mxu0 0.0
    %1192 = vmatpush1.msra.mxu0 0.0
    %1193 = vmatprep.subr.mxu0 0.0
    %1194 = vmatpush1.msra.mxu0 0.0
    %1195 = vmatprep.subr.mxu0 0.0
    %1196 = vmatpush1.msra.mxu0 0.0
    %1197 = vmatprep.subr.mxu0 0.0
    %1198 = vmatpush1.msra.mxu0 0.0
    %1199 = vmatprep.subr.mxu0 0.0
    %1200 = vmatpush1.msra.mxu0 0.0
    %1201 = vmatprep.subr.mxu0 0.0
    %1202 = vmatpush1.msra.mxu0 0.0
    %1203 = vmatprep.subr.mxu0 0.0
    %1204 = vmatpush1.msra.mxu0 0.0
    %1205 = vmatprep.subr.mxu0 0.0
    %1206 = vmatpush1.msra.mxu0 0.0
    %1207 = vmatprep.subr.mxu0 0.0
    %1208 = vmatpush1.msra.mxu0 0.0
    %1209 = vmatprep.subr.mxu0 0.0
    %1210 = vmatpush1.msra.mxu0 0.0
    %1211 = vmatprep.subr.mxu0 0.0
    %1212 = vmatpush1.msra.mxu0 0.0
    %1213 = vmatprep.subr.mxu0 0.0
    %1214 = vmatpush1.msra.mxu0 0.0
    %1215 = vmatprep.subr.mxu0 0.0
    %1216 = vmatpush1.msra.mxu0 0.0
    %1217 = vmatprep.subr.mxu0 0.0
    %1218 = vmatpush1.msra.mxu0 0.0
    %1219 = vmatprep.subr.mxu0 0.0
    %1220 = vmatpush1.msra.mxu0 0.0
    %1221 = vmatprep.subr.mxu0 0.0
    %1222 = vmatpush1.msra.mxu0 0.0
    %1223 = vmatprep.subr.mxu0 0.0
    %1224 = vmatpush1.msra.mxu0 0.0
    %1225 = vmatprep.subr.mxu0 0.0
    %1226 = vmatpush1.msra.mxu0 0.0
    %1227 = vmatprep.subr.mxu0 0.0
    %1228 = vmatpush1.msra.mxu0 0.0
    %1229 = vmatprep.subr.mxu0 0.0
    %1230 = vmatpush1.msra.mxu0 0.0
    %1231 = vmatprep.subr.mxu0 0.0
    %1232 = vmatpush1.msra.mxu0 0.0
    %1233 = vmatprep.mubr.f32.mxu0 0.0
    %1234 = vmatmul.mubr.f32.gmra.mrb[0].mxu0 %v1167
    %v1235 = vpop.f32.mrb[0].mxu0
    %v1236 = vadd.f32 %v1163, %v1235
    %v1237 = vpop.f32.mrb[0].mxu0
    %1238 = vdwg.mxu0
    %v1239 = vmax.f32 %v1236, 0.0
    %v1240 = vld [vmem:[%s1 + $0x50] sm:$0xff]
    %v1241 = vld [vmem:[%s1 + $0x58] sm:$0xff]
    %v1242 = vld [vmem:[%s1 + $0x60] sm:$0xff]
    %v1243 = vld [vmem:[%s1 + $0x68] sm:$0xff]
    %v1244 = vld [vmem:[%s1 + $0x70] sm:$0xff]
    %v1245 = vld [vmem:[%s1 + $0x78] sm:$0xff]
    %v1246 = vld [vmem:[%s1 + $0x80] sm:$0xff]
    %v1247 = vld [vmem:[%s1 + $0x88] sm:$0xff]
    %v1248 = vld [vmem:[%s1 + $0x9b] sm:$0x1]
    %v1249 = vlaneseq
    %v1250 = vshrl.u32 %v1249, 7
    %v1251 = vsub.s32 0, %v1250
    %v1252 = vrot.slane %v1248, %v1251
    %vm1253 = vcmask 523264
    %v1255 = vsel %vm1253, %v1239, 0
    %1257 = vmatprep.subr.mxu0 0.0
    %1258 = vmatpush1.msra.mxu0 %v1240
    %1259 = vmatprep.subr.mxu0 0.0
    %1260 = vmatpush1.msra.mxu0 %v1241
    %1261 = vmatprep.subr.mxu0 0.0
    %1262 = vmatpush1.msra.mxu0 %v1242
    %1263 = vmatprep.subr.mxu0 0.0
    %1264 = vmatpush1.msra.mxu0 %v1243
    %1265 = vmatprep.subr.mxu0 0.0
    %1266 = vmatpush1.msra.mxu0 %v1244
    %1267 = vmatprep.subr.mxu0 0.0
    %1268 = vmatpush1.msra.mxu0 %v1245
    %1269 = vmatprep.subr.mxu0 0.0
    %1270 = vmatpush1.msra.mxu0 %v1246
    %1271 = vmatprep.subr.mxu0 0.0
    %1272 = vmatpush1.msra.mxu0 %v1247
    %1273 = vmatprep.subr.mxu0 0.0
    %1274 = vmatpush1.msra.mxu0 0.0
    %1275 = vmatprep.subr.mxu0 0.0
    %1276 = vmatpush1.msra.mxu0 0.0
    %1277 = vmatprep.subr.mxu0 0.0
    %1278 = vmatpush1.msra.mxu0 0.0
    %1279 = vmatprep.subr.mxu0 0.0
    %1280 = vmatpush1.msra.mxu0 0.0
    %1281 = vmatprep.subr.mxu0 0.0
    %1282 = vmatpush1.msra.mxu0 0.0
    %1283 = vmatprep.subr.mxu0 0.0
    %1284 = vmatpush1.msra.mxu0 0.0
    %1285 = vmatprep.subr.mxu0 0.0
    %1286 = vmatpush1.msra.mxu0 0.0
    %1287 = vmatprep.subr.mxu0 0.0
    %1288 = vmatpush1.msra.mxu0 0.0
    %1289 = vmatprep.subr.mxu0 0.0
    %1290 = vmatpush1.msra.mxu0 0.0
    %1291 = vmatprep.subr.mxu0 0.0
    %1292 = vmatpush1.msra.mxu0 0.0
    %1293 = vmatprep.subr.mxu0 0.0
    %1294 = vmatpush1.msra.mxu0 0.0
    %1295 = vmatprep.subr.mxu0 0.0
    %1296 = vmatpush1.msra.mxu0 0.0
    %1297 = vmatprep.subr.mxu0 0.0
    %1298 = vmatpush1.msra.mxu0 0.0
    %1299 = vmatprep.subr.mxu0 0.0
    %1300 = vmatpush1.msra.mxu0 0.0
    %1301 = vmatprep.subr.mxu0 0.0
    %1302 = vmatpush1.msra.mxu0 0.0
    %1303 = vmatprep.subr.mxu0 0.0
    %1304 = vmatpush1.msra.mxu0 0.0
    %1305 = vmatprep.subr.mxu0 0.0
    %1306 = vmatpush1.msra.mxu0 0.0
    %1307 = vmatprep.subr.mxu0 0.0
    %1308 = vmatpush1.msra.mxu0 0.0
    %1309 = vmatprep.subr.mxu0 0.0
    %1310 = vmatpush1.msra.mxu0 0.0
    %1311 = vmatprep.subr.mxu0 0.0
    %1312 = vmatpush1.msra.mxu0 0.0
    %1313 = vmatprep.subr.mxu0 0.0
    %1314 = vmatpush1.msra.mxu0 0.0
    %1315 = vmatprep.subr.mxu0 0.0
    %1316 = vmatpush1.msra.mxu0 0.0
    %1317 = vmatprep.subr.mxu0 0.0
    %1318 = vmatpush1.msra.mxu0 0.0
    %1319 = vmatprep.subr.mxu0 0.0
    %1320 = vmatpush1.msra.mxu0 0.0
    %1321 = vmatprep.mubr.f32.mxu0 0.0
    %1322 = vmatmul.mubr.f32.gmra.mrb[0].mxu0 %v1255
    %v1323 = vpop.f32.mrb[0].mxu0
    %v1324 = vadd.f32 %v1252, %v1323
    %v1325 = vpop.f32.mrb[0].mxu0
    %1326 = vdwg.mxu0
    %v1327 = vmax.f32 %v1324, 0.0
    %v1328 = vld [vmem:[%s1 + $0x9c] sm:$0x1]
    %v1329 = vlaneseq
    %v1330 = vshrl.u32 %v1329, 7
    %v1331 = vsub.s32 0, %v1330
    %v1332 = vrot.slane %v1328, %v1331
    %v1333 = vmul.f32 %v1327, %v1332
    %1334 = vadd.xlane.f32.xlu0 %v1333
    %v1335 = vpop.xlane.xlu0 %1334
    %s1336 = sld [smem:[#allocation2 + $0x50]]
    %v1337 = vstv %s1336
    %v1338 = vadd.f32 %v1335, %v1337
    %vm1339 = vcmask 7168
    %1340 = vst.msk [vmem:[%s3] sm:$0xff] %vm1339, %v1338
    // Predicated region
    $region18: #{image_critic_forward.1} parent=1 // pred_check
      _
    $region19: #{image_critic_forward.1} parent=1 // pred_check_branch
      %1342 = sbr.rel (0) target = $region21
    $region20: #{image_critic_forward.1} parent=1 // pred_region
      _
    $region21: #{image_critic_forward.1} parent=1 // pred_fallthru
      _
    // Predicated region
    $region22: #{image_critic_forward.1} parent=1 // pred_check
      _
    $region23: #{image_critic_forward.1} parent=1 // pred_check_branch
      %1344 = sbr.rel (0) target = $region25
    $region24: #{image_critic_forward.1} parent=1 // pred_region
      _
    $region25: #{image_critic_forward.1} parent=1 // pred_fallthru
      _
    %1345 = vsyncpa [#allocation3], 1

</llo_original>
